<compile_context>
chip_gen: v7x
topology: tpu7x:2x2x1
jax: 0.10.0
libtpu: 0.0.40
codegen_flags: <defaults>
</compile_context>

<pallas_src>
import jax
import jax.numpy as jnp
from jax import lax
from jax.experimental import pallas as pl
from jax.experimental.pallas import tpu as pltpu

BN_EPS = 1e-5


# ---------------------------------------------------------------------------
# Helpers
# ---------------------------------------------------------------------------
def fold_bn(gamma, beta, mean, var):
    scale = gamma / jnp.sqrt(var + BN_EPS)
    bias = beta - mean * scale
    return scale, bias


def _round_up(x, m):
    return ((x + m - 1) // m) * m


def _pad_axis(a, axis, new_size):
    pad = new_size - a.shape[axis]
    if pad == 0:
        return a
    widths = [(0, 0)] * a.ndim
    widths[axis] = (0, pad)
    return jnp.pad(a, widths)


# ---------------------------------------------------------------------------
# Fused kernel body (expand [+shortcut] -> depthwise -> project -> add)
# ---------------------------------------------------------------------------
def _make_fused_kernel(H, W, Ho, Wo, hidden_p, stride, has_shortcut):
    Wpad = W + 16   # interior at columns [8 : 8+W]; halo columns 7 and 8+W

    def kernel(x_ref, we_ref, be_ref, wdw_ref, b2_ref, w3_ref, b3_ref,
               o_ref, pad_ref):
        # ---- zero only the halo strips (aligned, cheap; interior is fully
        # ---- overwritten every step so a full zero-fill would be wasted work)
        zrow = jnp.zeros((Wpad, hidden_p), jnp.float32)
        pad_ref[0] = zrow
        pad_ref[H + 1] = zrow
        zcol = jnp.zeros((H + 2, 8, hidden_p), jnp.float32)
        pad_ref[:, 0:8, :] = zcol
        pad_ref[:, W + 8:W + 16, :] = zcol

        # ---- expand 1x1 (+ fused shortcut projection): one MXU pass ---------
        x2b = x_ref[0]                                       # (H*W, Cin) bf16
        h_all = jnp.dot(x2b, we_ref[...], preferred_element_type=jnp.float32)
        h_all = h_all + be_ref[...]                          # folded BN bias
        h1 = jnp.maximum(h_all[:, :hidden_p], 0.0)           # ReLU (expand only)

        # ---- stage into scratch at a sublane-aligned column offset (8) -------
        pad_ref[1:H + 1, 8:8 + W, :] = h1.reshape(H, W, hidden_p)

        # ---- depthwise 3x3 + folded BN + ReLU; stride via strided reads ------
        acc = jnp.zeros((Ho, Wo, hidden_p), jnp.float32)
        for kh in range(3):
            for kw in range(3):
                if stride == 1:
                    win = pad_ref[pl.ds(kh, Ho), pl.ds(7 + kw, Wo), :]
                else:
                    win = pad_ref[pl.ds(kh, Ho, 2), pl.ds(7 + kw, Wo, 2), :]
                tap = wdw_ref[kh * 3 + kw, :].reshape(1, 1, hidden_p)
                acc = acc + win * tap
        h2 = jnp.maximum(acc + b2_ref[...].reshape(1, 1, hidden_p), 0.0)
        h2 = h2.reshape(Ho * Wo, hidden_p).astype(jnp.bfloat16)

        # ---- project 1x1 + folded BN ------------------------------------------
        y = jnp.dot(h2, w3_ref[...], preferred_element_type=jnp.float32)
        y = y + b3_ref[...]

        # ---- shortcut (stride == 1 only, as in the PyTorch module) ------------
        if has_shortcut:
            y = y + h_all[:, hidden_p:]    # projected (or identity) shortcut

        o_ref[0] = y

    return kernel


# ---------------------------------------------------------------------------
# NHWC forward (kernel-native layout)
# ---------------------------------------------------------------------------
def inverted_residual_forward_nhwc(x_nhwc, params, in_planes, out_planes, stride):
    assert stride in (1, 2)
    hidden = params["hidden"]

    x = x_nhwc.astype(jnp.bfloat16)          # bf16 DMA; f32 accumulation in-kernel
    N, H, W, Cin = x.shape
    assert Cin == in_planes
    if stride == 2:
        # TODO(synk): odd H/W would need floor-division output sizing (PyTorch).
        assert H % 2 == 0 and W % 2 == 0, "stride-2 path assumes even H, W"
    Ho, Wo = (H, W) if stride == 1 else (H // 2, W // 2)
    has_shortcut = (stride == 1)

    # lane-pad channel dims to multiples of 128 (lane-dense stores, full MXU cols)
    hidden_p = _round_up(hidden, 128)
    cout_p = _round_up(out_planes, 128)

    # fold BN (inference mode) into weights + per-channel bias
    # NOTE: BN scale is folded into bf16 weights; for extreme trained gamma/var,
    # apply the scale as a separate f32 epilogue multiply instead.
    s1, b1 = fold_bn(*params["bn1"])
    s2, b2 = fold_bn(*params["bn2"])
    s3, b3 = fold_bn(*params["bn3"])

    w1f = _pad_axis(params["w1"] * s1[None, :], 1, hidden_p)              # (Cin, hid_p)
    b1f = _pad_axis(b1, 0, hidden_p)
    wdwf = _pad_axis((params["w2"] * s2[None, None, :]).reshape(9, hidden),
                     1, hidden_p)                                          # (9, hid_p)
    b2f = _pad_axis(b2, 0, hidden_p)
    w3f = _pad_axis(_pad_axis(params["w3"] * s3[None, :], 0, hidden_p), 1, cout_p)
    b3f = _pad_axis(b3, 0, cout_p)

    if has_shortcut:
        if in_planes != out_planes:
            ss, bs = fold_bn(*params["bns"])
            wsf = _pad_axis(params["ws"] * ss[None, :], 1, cout_p)         # (Cin, out_p)
            bsf = _pad_axis(bs, 0, cout_p)
        else:
            # identity shortcut expressed as an exact identity weight so it rides
            # the same fused expand matmul
            wsf = jnp.eye(in_planes, cout_p, dtype=jnp.float32)
            bsf = jnp.zeros((cout_p,), jnp.float32)
        w_exp = jnp.concatenate([w1f, wsf], axis=1)        # (Cin, hid_p + out_p)
        b_exp = jnp.concatenate([b1f, bsf], axis=0)
    else:
        w_exp, b_exp = w1f, b1f
    exp_cols = w_exp.shape[1]

    x2d = x.reshape(N, H * W, Cin)

    inputs = [
        x2d,
        w_exp.astype(jnp.bfloat16),
        b_exp.reshape(1, exp_cols).astype(jnp.float32),
        wdwf.astype(jnp.float32),
        b2f.reshape(1, hidden_p).astype(jnp.float32),
        w3f.astype(jnp.bfloat16),
        b3f.reshape(1, cout_p).astype(jnp.float32),
    ]
    in_specs = [
        pl.BlockSpec((1, H * W, Cin), lambda b: (b, 0, 0)),
        pl.BlockSpec((Cin, exp_cols), lambda b: (0, 0)),
        pl.BlockSpec((1, exp_cols), lambda b: (0, 0)),
        pl.BlockSpec((9, hidden_p), lambda b: (0, 0)),
        pl.BlockSpec((1, hidden_p), lambda b: (0, 0)),
        pl.BlockSpec((hidden_p, cout_p), lambda b: (0, 0)),
        pl.BlockSpec((1, cout_p), lambda b: (0, 0)),
    ]

    kernel = _make_fused_kernel(H, W, Ho, Wo, hidden_p, stride, has_shortcut)

    # explicit VMEM budget (safe on v5e/v6e 128 MiB and v7x 64 MiB physical)
    scratch_bytes = (H + 2) * (W + 16) * hidden_p * 4
    io_bytes = (H * W * Cin * 2 + Cin * exp_cols * 2 + exp_cols * 4
                + 9 * hidden_p * 4 + hidden_p * 4 + hidden_p * cout_p * 2
                + cout_p * 4 + Ho * Wo * cout_p * 4)
    vmem_limit = int(min(max(2 * (scratch_bytes + 2 * io_bytes),
                             32 * 1024 * 1024), 64 * 1024 * 1024))

    out2d = pl.pallas_call(
        kernel,
        out_shape=jax.ShapeDtypeStruct((N, Ho * Wo, cout_p), jnp.float32),
        grid_spec=pltpu.PrefetchScalarGridSpec(
            num_scalar_prefetch=0,
            grid=(N,),
            in_specs=in_specs,
            out_specs=pl.BlockSpec((1, Ho * Wo, cout_p), lambda b: (b, 0, 0)),
            scratch_shapes=[pltpu.VMEM((H + 2, W + 16, hidden_p), jnp.float32)],
        ),
        compiler_params=pltpu.CompilerParams(
            dimension_semantics=("parallel",),
            vmem_limit_bytes=vmem_limit),
    )(*inputs)

    out = out2d[:, :, :out_planes].reshape(N, Ho, Wo, out_planes)
    return out


# ---------------------------------------------------------------------------
# NCHW wrapper (PyTorch parity only — keep NHWC end-to-end in a real network)
# ---------------------------------------------------------------------------
def inverted_residual_forward(x_nchw, params, in_planes, out_planes, stride):
    x = jnp.transpose(x_nchw, (0, 2, 3, 1))
    out = inverted_residual_forward_nhwc(x, params, in_planes, out_planes, stride)
    return jnp.transpose(out, (0, 3, 1, 2))


# ---------------------------------------------------------------------------
# Parameter construction
# ---------------------------------------------------------------------------
def make_params(key, in_planes, out_planes, expand_ratio):
    hidden = int(round(in_planes * expand_ratio))
    ks = jax.random.split(key, 8)

    def bn_params(k, c):
        k1, k2, k3, k4 = jax.random.split(k, 4)
        gamma = jax.random.uniform(k1, (c,), jnp.float32, 0.5, 1.5)
        beta = 0.1 * jax.random.normal(k2, (c,), jnp.float32)
        mean = 0.1 * jax.random.normal(k3, (c,), jnp.float32)
        var = jax.random.uniform(k4, (c,), jnp.float32, 0.5, 1.5)
        return gamma, beta, mean, var

    return {
        "w1": 0.1 * jax.random.normal(ks[0], (in_planes, hidden), jnp.float32),
        "bn1": bn_params(ks[1], hidden),
        "w2": 0.1 * jax.random.normal(ks[2], (3, 3, hidden), jnp.float32),
        "bn2": bn_params(ks[3], hidden),
        "w3": 0.1 * jax.random.normal(ks[4], (hidden, out_planes), jnp.float32),
        "bn3": bn_params(ks[5], out_planes),
        "ws": 0.1 * jax.random.normal(ks[6], (in_planes, out_planes), jnp.float32),
        "bns": bn_params(ks[7], out_planes),
        "hidden": hidden,
    }


# ---------------------------------------------------------------------------
# Pure-JAX reference (lax convs, f32) for the correctness check
# ---------------------------------------------------------------------------
def reference_forward(x_nchw, params, in_planes, out_planes, stride):
    hidden = params["hidden"]
    x = jnp.transpose(x_nchw, (0, 2, 3, 1)).astype(jnp.float32)
    dn = ("NHWC", "HWIO", "NHWC")

    def bn(y, bnp):
        g, b, m, v = bnp
        return (y - m) / jnp.sqrt(v + BN_EPS) * g + b

    y = lax.conv_general_dilated(x, params["w1"].reshape(1, 1, in_planes, hidden),
                                 (1, 1), "VALID", dimension_numbers=dn)
    y = jax.nn.relu(bn(y, params["bn1"]))
    wdw = params["w2"].reshape(3, 3, 1, hidden)
    y = lax.conv_general_dilated(y, wdw, (stride, stride), ((1, 1), (1, 1)),
                                 dimension_numbers=dn, feature_group_count=hidden)
    y = jax.nn.relu(bn(y, params["bn2"]))
    y = lax.conv_general_dilated(y, params["w3"].reshape(1, 1, hidden, out_planes),
                                 (1, 1), "VALID", dimension_numbers=dn)
    y = bn(y, params["bn3"])
    if stride == 1:
        if in_planes != out_planes:
            sc = lax.conv_general_dilated(
                x, params["ws"].reshape(1, 1, in_planes, out_planes),
                (1, 1), "VALID", dimension_numbers=dn)
            sc = bn(sc, params["bns"])
        else:
            sc = x
        y = y + sc
    return jnp.transpose(y, (0, 3, 1, 2))


if __name__ == "__main__":
    key = jax.random.PRNGKey(0)
    N, H, W = 2, 16, 16
    configs = [
        # (in_planes, out_planes, stride, expand_ratio)
        (4, 8, 1, 3),   # stride-1, projected shortcut (in != out)
        (8, 8, 1, 6),   # stride-1, identity shortcut  (in == out)
        (4, 8, 2, 3),   # stride-2, no shortcut
    ]

    for idx, (cin, cout, stride, exp) in enumerate(configs):
        kx, kp, key = jax.random.split(key, 3)
        x = jax.random.normal(kx, (N, cin, H, W), jnp.float32)
        params = make_params(kp, cin, cout, exp)

        out = inverted_residual_forward(x, params, cin, cout, stride)
        out = jax.block_until_ready(out)

        ref = reference_forward(x, params, cin, cout, stride)
        Ho = H if stride == 1 else H // 2
        Wo = W if stride == 1 else W // 2
        assert out.shape == ref.shape == (N, cout, Ho, Wo)
        # bf16 MXU operands / bf16 x + f32 accumulation -> loosened tolerance
        max_err = float(jnp.max(jnp.abs(out - ref)))
        assert jnp.allclose(out, ref, rtol=3e-2, atol=3e-2), (
            f"config {idx} mismatch, max abs err {max_err}")

    print("KERNEL_OK")
</pallas_src>

<mosaic_0001>
module attributes {stable_mosaic.version = 11 : i64} {
  func.func @kernel(%arg0: i32, %arg1: memref<1x256x4xbf16, #tpu.memory_space<vmem>>, %arg2: memref<4x256xbf16, #tpu.memory_space<vmem>>, %arg3: memref<1x256xf32, #tpu.memory_space<vmem>>, %arg4: memref<9x128xf32, #tpu.memory_space<vmem>>, %arg5: memref<1x128xf32, #tpu.memory_space<vmem>>, %arg6: memref<128x128xbf16, #tpu.memory_space<vmem>>, %arg7: memref<1x128xf32, #tpu.memory_space<vmem>>, %arg8: memref<1x256x128xf32, #tpu.memory_space<vmem>>, %arg9: memref<18x32x128xf32, #tpu.memory_space<vmem>>) attributes {dimension_semantics = [#tpu.dimension_semantics<parallel>], iteration_bounds = array<i64: 2>, scalar_prefetch = 0 : i64, scratch_operands = 1 : i64, tpu.core_type = #tpu.core_type<tc>, window_params = [{transform_indices = @transform_0, window_bounds = array<i64: 1, 256, 4>}, {pipeline_mode = #tpu.pipeline_mode<synchronous>, transform_indices = @transform_1, window_bounds = array<i64: 4, 256>}, {pipeline_mode = #tpu.pipeline_mode<synchronous>, transform_indices = @transform_2, window_bounds = array<i64: 1, 256>}, {pipeline_mode = #tpu.pipeline_mode<synchronous>, transform_indices = @transform_3, window_bounds = array<i64: 9, 128>}, {pipeline_mode = #tpu.pipeline_mode<synchronous>, transform_indices = @transform_4, window_bounds = array<i64: 1, 128>}, {pipeline_mode = #tpu.pipeline_mode<synchronous>, transform_indices = @transform_5, window_bounds = array<i64: 128, 128>}, {pipeline_mode = #tpu.pipeline_mode<synchronous>, transform_indices = @transform_6, window_bounds = array<i64: 1, 128>}, {transform_indices = @transform_7, window_bounds = array<i64: 1, 256, 128>}]} {
    %cst = arith.constant 0.000000e+00 : f32
    %0 = vector.broadcast %cst : f32 to vector<32x128xf32>
    %c0 = arith.constant 0 : index
    %c0_0 = arith.constant 0 : index
    %c0_1 = arith.constant 0 : index
    %1 = vector.load %arg9[%c0, %c0_0, %c0_1] : memref<18x32x128xf32, #tpu.memory_space<vmem>>, vector<1x32x128xf32>
    %2 = vector.shape_cast %1 : vector<1x32x128xf32> to vector<32x128xf32>
    %3 = vector.shape_cast %0 : vector<32x128xf32> to vector<1x32x128xf32>
    tpu.vector_store %arg9[%c0, %c0_0, %c0_1], %3 {strides = array<i32>} : memref<18x32x128xf32, #tpu.memory_space<vmem>>, vector<1x32x128xf32>,
    %c17 = arith.constant 17 : index
    %c0_2 = arith.constant 0 : index
    %c0_3 = arith.constant 0 : index
    %4 = vector.load %arg9[%c17, %c0_2, %c0_3] : memref<18x32x128xf32, #tpu.memory_space<vmem>>, vector<1x32x128xf32>
    %5 = vector.shape_cast %4 : vector<1x32x128xf32> to vector<32x128xf32>
    %6 = vector.shape_cast %0 : vector<32x128xf32> to vector<1x32x128xf32>
    tpu.vector_store %arg9[%c17, %c0_2, %c0_3], %6 {strides = array<i32>} : memref<18x32x128xf32, #tpu.memory_space<vmem>>, vector<1x32x128xf32>,
    %cst_4 = arith.constant 0.000000e+00 : f32
    %7 = vector.broadcast %cst_4 : f32 to vector<18x8x128xf32>
    %c0_5 = arith.constant 0 : index
    %c0_6 = arith.constant 0 : index
    %c0_7 = arith.constant 0 : index
    %8 = vector.load %arg9[%c0_5, %c0_6, %c0_7] : memref<18x32x128xf32, #tpu.memory_space<vmem>>, vector<18x8x128xf32>
    tpu.vector_store %arg9[%c0_5, %c0_6, %c0_7], %7 {strides = array<i32>} : memref<18x32x128xf32, #tpu.memory_space<vmem>>, vector<18x8x128xf32>,
    %c0_8 = arith.constant 0 : index
    %c24 = arith.constant 24 : index
    %c0_9 = arith.constant 0 : index
    %9 = vector.load %arg9[%c0_8, %c24, %c0_9] : memref<18x32x128xf32, #tpu.memory_space<vmem>>, vector<18x8x128xf32>
    tpu.vector_store %arg9[%c0_8, %c24, %c0_9], %7 {strides = array<i32>} : memref<18x32x128xf32, #tpu.memory_space<vmem>>, vector<18x8x128xf32>,
    %c0_10 = arith.constant 0 : index
    %c0_11 = arith.constant 0 : index
    %c0_12 = arith.constant 0 : index
    %10 = vector.load %arg1[%c0_10, %c0_11, %c0_12] : memref<1x256x4xbf16, #tpu.memory_space<vmem>>, vector<1x256x4xbf16>
    %11 = vector.shape_cast %10 : vector<1x256x4xbf16> to vector<256x4xbf16>
    %c0_13 = arith.constant 0 : index
    %c0_14 = arith.constant 0 : index
    %12 = vector.load %arg2[%c0_13, %c0_14] : memref<4x256xbf16, #tpu.memory_space<vmem>>, vector<4x256xbf16>
    %cst_15 = arith.constant dense<0.000000e+00> : vector<256x256xf32>
    %13 = tpu.matmul %11, %12, %cst_15 {dimension_numbers = #tpu.dot_dimension_numbers<[1], [0], [0], [1], [0, 0, 1, 1], [], []>} : vector<256x4xbf16>, vector<4x256xbf16>, vector<256x256xf32> -> vector<256x256xf32>
    %c0_16 = arith.constant 0 : index
    %c0_17 = arith.constant 0 : index
    %14 = vector.load %arg3[%c0_16, %c0_17] : memref<1x256xf32, #tpu.memory_space<vmem>>, vector<1x256xf32>
    %15 = vector.broadcast %14 : vector<1x256xf32> to vector<256x256xf32>
    %16 = arith.addf %13, %15 : vector<256x256xf32>
    %17 = vector.extract_strided_slice %16 {offsets = [0, 0], sizes = [256, 128], strides = [1, 1]} : vector<256x256xf32> to vector<256x128xf32>
    %cst_18 = arith.constant 0.000000e+00 : f32
    %18 = vector.broadcast %cst_18 : f32 to vector<256x128xf32>
    %19 = arith.maximumf %17, %18 : vector<256x128xf32>
    %20 = vector.shape_cast %19 : vector<256x128xf32> to vector<16x16x128xf32>
    %c1 = arith.constant 1 : index
    %c8 = arith.constant 8 : index
    %c0_19 = arith.constant 0 : index
    %21 = vector.load %arg9[%c1, %c8, %c0_19] : memref<18x32x128xf32, #tpu.memory_space<vmem>>, vector<16x16x128xf32>
    tpu.vector_store %arg9[%c1, %c8, %c0_19], %20 {strides = array<i32>} : memref<18x32x128xf32, #tpu.memory_space<vmem>>, vector<16x16x128xf32>,
    %cst_20 = arith.constant 0.000000e+00 : f32
    %22 = vector.broadcast %cst_20 : f32 to vector<16x16x128xf32>
    %c0_21 = arith.constant 0 : index
    %c7 = arith.constant 7 : index
    %c0_22 = arith.constant 0 : index
    %23 = vector.load %arg9[%c0_21, %c7, %c0_22] : memref<18x32x128xf32, #tpu.memory_space<vmem>>, vector<16x16x128xf32>
    %c0_23 = arith.constant 0 : index
    %c0_24 = arith.constant 0 : index
    %24 = vector.load %arg4[%c0_23, %c0_24] : memref<9x128xf32, #tpu.memory_space<vmem>>, vector<1x128xf32>
    %25 = vector.shape_cast %24 : vector<1x128xf32> to vector<128xf32>
    %26 = vector.shape_cast %25 : vector<128xf32> to vector<1x1x128xf32>
    %27 = vector.broadcast %26 : vector<1x1x128xf32> to vector<16x16x128xf32>
    %28 = arith.mulf %23, %27 : vector<16x16x128xf32>
    %29 = arith.addf %22, %28 : vector<16x16x128xf32>
    %c0_25 = arith.constant 0 : index
    %c8_26 = arith.constant 8 : index
    %c0_27 = arith.constant 0 : index
    %30 = vector.load %arg9[%c0_25, %c8_26, %c0_27] : memref<18x32x128xf32, #tpu.memory_space<vmem>>, vector<16x16x128xf32>
    %c1_28 = arith.constant 1 : index
    %c0_29 = arith.constant 0 : index
    %31 = vector.load %arg4[%c1_28, %c0_29] : memref<9x128xf32, #tpu.memory_space<vmem>>, vector<1x128xf32>
    %32 = vector.shape_cast %31 : vector<1x128xf32> to vector<128xf32>
    %33 = vector.shape_cast %32 : vector<128xf32> to vector<1x1x128xf32>
    %34 = vector.broadcast %33 : vector<1x1x128xf32> to vector<16x16x128xf32>
    %35 = arith.mulf %30, %34 : vector<16x16x128xf32>
    %36 = arith.addf %29, %35 : vector<16x16x128xf32>
    %c0_30 = arith.constant 0 : index
    %c9 = arith.constant 9 : index
    %c0_31 = arith.constant 0 : index
    %37 = vector.load %arg9[%c0_30, %c9, %c0_31] : memref<18x32x128xf32, #tpu.memory_space<vmem>>, vector<16x16x128xf32>
    %c2 = arith.constant 2 : index
    %c0_32 = arith.constant 0 : index
    %38 = vector.load %arg4[%c2, %c0_32] : memref<9x128xf32, #tpu.memory_space<vmem>>, vector<1x128xf32>
    %39 = vector.shape_cast %38 : vector<1x128xf32> to vector<128xf32>
    %40 = vector.shape_cast %39 : vector<128xf32> to vector<1x1x128xf32>
    %41 = vector.broadcast %40 : vector<1x1x128xf32> to vector<16x16x128xf32>
    %42 = arith.mulf %37, %41 : vector<16x16x128xf32>
    %43 = arith.addf %36, %42 : vector<16x16x128xf32>
    %c1_33 = arith.constant 1 : index
    %c7_34 = arith.constant 7 : index
    %c0_35 = arith.constant 0 : index
    %44 = vector.load %arg9[%c1_33, %c7_34, %c0_35] : memref<18x32x128xf32, #tpu.memory_space<vmem>>, vector<16x16x128xf32>
    %c3 = arith.constant 3 : index
    %c0_36 = arith.constant 0 : index
    %45 = vector.load %arg4[%c3, %c0_36] : memref<9x128xf32, #tpu.memory_space<vmem>>, vector<1x128xf32>
    %46 = vector.shape_cast %45 : vector<1x128xf32> to vector<128xf32>
    %47 = vector.shape_cast %46 : vector<128xf32> to vector<1x1x128xf32>
    %48 = vector.broadcast %47 : vector<1x1x128xf32> to vector<16x16x128xf32>
    %49 = arith.mulf %44, %48 : vector<16x16x128xf32>
    %50 = arith.addf %43, %49 : vector<16x16x128xf32>
    %c1_37 = arith.constant 1 : index
    %c8_38 = arith.constant 8 : index
    %c0_39 = arith.constant 0 : index
    %51 = vector.load %arg9[%c1_37, %c8_38, %c0_39] : memref<18x32x128xf32, #tpu.memory_space<vmem>>, vector<16x16x128xf32>
    %c4 = arith.constant 4 : index
    %c0_40 = arith.constant 0 : index
    %52 = vector.load %arg4[%c4, %c0_40] : memref<9x128xf32, #tpu.memory_space<vmem>>, vector<1x128xf32>
    %53 = vector.shape_cast %52 : vector<1x128xf32> to vector<128xf32>
    %54 = vector.shape_cast %53 : vector<128xf32> to vector<1x1x128xf32>
    %55 = vector.broadcast %54 : vector<1x1x128xf32> to vector<16x16x128xf32>
    %56 = arith.mulf %51, %55 : vector<16x16x128xf32>
    %57 = arith.addf %50, %56 : vector<16x16x128xf32>
    %c1_41 = arith.constant 1 : index
    %c9_42 = arith.constant 9 : index
    %c0_43 = arith.constant 0 : index
    %58 = vector.load %arg9[%c1_41, %c9_42, %c0_43] : memref<18x32x128xf32, #tpu.memory_space<vmem>>, vector<16x16x128xf32>
    %c5 = arith.constant 5 : index
    %c0_44 = arith.constant 0 : index
    %59 = vector.load %arg4[%c5, %c0_44] : memref<9x128xf32, #tpu.memory_space<vmem>>, vector<1x128xf32>
    %60 = vector.shape_cast %59 : vector<1x128xf32> to vector<128xf32>
    %61 = vector.shape_cast %60 : vector<128xf32> to vector<1x1x128xf32>
    %62 = vector.broadcast %61 : vector<1x1x128xf32> to vector<16x16x128xf32>
    %63 = arith.mulf %58, %62 : vector<16x16x128xf32>
    %64 = arith.addf %57, %63 : vector<16x16x128xf32>
    %c2_45 = arith.constant 2 : index
    %c7_46 = arith.constant 7 : index
    %c0_47 = arith.constant 0 : index
    %65 = vector.load %arg9[%c2_45, %c7_46, %c0_47] : memref<18x32x128xf32, #tpu.memory_space<vmem>>, vector<16x16x128xf32>
    %c6 = arith.constant 6 : index
    %c0_48 = arith.constant 0 : index
    %66 = vector.load %arg4[%c6, %c0_48] : memref<9x128xf32, #tpu.memory_space<vmem>>, vector<1x128xf32>
    %67 = vector.shape_cast %66 : vector<1x128xf32> to vector<128xf32>
    %68 = vector.shape_cast %67 : vector<128xf32> to vector<1x1x128xf32>
    %69 = vector.broadcast %68 : vector<1x1x128xf32> to vector<16x16x128xf32>
    %70 = arith.mulf %65, %69 : vector<16x16x128xf32>
    %71 = arith.addf %64, %70 : vector<16x16x128xf32>
    %c2_49 = arith.constant 2 : index
    %c8_50 = arith.constant 8 : index
    %c0_51 = arith.constant 0 : index
    %72 = vector.load %arg9[%c2_49, %c8_50, %c0_51] : memref<18x32x128xf32, #tpu.memory_space<vmem>>, vector<16x16x128xf32>
    %c7_52 = arith.constant 7 : index
    %c0_53 = arith.constant 0 : index
    %73 = vector.load %arg4[%c7_52, %c0_53] : memref<9x128xf32, #tpu.memory_space<vmem>>, vector<1x128xf32>
    %74 = vector.shape_cast %73 : vector<1x128xf32> to vector<128xf32>
    %75 = vector.shape_cast %74 : vector<128xf32> to vector<1x1x128xf32>
    %76 = vector.broadcast %75 : vector<1x1x128xf32> to vector<16x16x128xf32>
    %77 = arith.mulf %72, %76 : vector<16x16x128xf32>
    %78 = arith.addf %71, %77 : vector<16x16x128xf32>
    %c2_54 = arith.constant 2 : index
    %c9_55 = arith.constant 9 : index
    %c0_56 = arith.constant 0 : index
    %79 = vector.load %arg9[%c2_54, %c9_55, %c0_56] : memref<18x32x128xf32, #tpu.memory_space<vmem>>, vector<16x16x128xf32>
    %c8_57 = arith.constant 8 : index
    %c0_58 = arith.constant 0 : index
    %80 = vector.load %arg4[%c8_57, %c0_58] : memref<9x128xf32, #tpu.memory_space<vmem>>, vector<1x128xf32>
    %81 = vector.shape_cast %80 : vector<1x128xf32> to vector<128xf32>
    %82 = vector.shape_cast %81 : vector<128xf32> to vector<1x1x128xf32>
    %83 = vector.broadcast %82 : vector<1x1x128xf32> to vector<16x16x128xf32>
    %84 = arith.mulf %79, %83 : vector<16x16x128xf32>
    %85 = arith.addf %78, %84 : vector<16x16x128xf32>
    %c0_59 = arith.constant 0 : index
    %c0_60 = arith.constant 0 : index
    %86 = vector.load %arg5[%c0_59, %c0_60] : memref<1x128xf32, #tpu.memory_space<vmem>>, vector<1x128xf32>
    %87 = vector.shape_cast %86 : vector<1x128xf32> to vector<1x1x128xf32>
    %88 = vector.broadcast %87 : vector<1x1x128xf32> to vector<16x16x128xf32>
    %89 = arith.addf %85, %88 : vector<16x16x128xf32>
    %cst_61 = arith.constant 0.000000e+00 : f32
    %90 = vector.broadcast %cst_61 : f32 to vector<16x16x128xf32>
    %91 = arith.maximumf %89, %90 : vector<16x16x128xf32>
    %92 = vector.shape_cast %91 : vector<16x16x128xf32> to vector<256x128xf32>
    %93 = arith.truncf %92 : vector<256x128xf32> to vector<256x128xbf16>
    %c0_62 = arith.constant 0 : index
    %c0_63 = arith.constant 0 : index
    %94 = vector.load %arg6[%c0_62, %c0_63] : memref<128x128xbf16, #tpu.memory_space<vmem>>, vector<128x128xbf16>
    %cst_64 = arith.constant dense<0.000000e+00> : vector<256x128xf32>
    %95 = tpu.matmul %93, %94, %cst_64 {dimension_numbers = #tpu.dot_dimension_numbers<[1], [0], [0], [1], [0, 0, 1, 1], [], []>} : vector<256x128xbf16>, vector<128x128xbf16>, vector<256x128xf32> -> vector<256x128xf32>
    %c0_65 = arith.constant 0 : index
    %c0_66 = arith.constant 0 : index
    %96 = vector.load %arg7[%c0_65, %c0_66] : memref<1x128xf32, #tpu.memory_space<vmem>>, vector<1x128xf32>
    %97 = vector.broadcast %96 : vector<1x128xf32> to vector<256x128xf32>
    %98 = arith.addf %95, %97 : vector<256x128xf32>
    %99 = vector.extract_strided_slice %16 {offsets = [0, 128], sizes = [256, 128], strides = [1, 1]} : vector<256x256xf32> to vector<256x128xf32>
    %100 = arith.addf %98, %99 : vector<256x128xf32>
    %c0_67 = arith.constant 0 : index
    %c0_68 = arith.constant 0 : index
    %c0_69 = arith.constant 0 : index
    %101 = vector.load %arg8[%c0_67, %c0_68, %c0_69] : memref<1x256x128xf32, #tpu.memory_space<vmem>>, vector<1x256x128xf32>
    %102 = vector.shape_cast %101 : vector<1x256x128xf32> to vector<256x128xf32>
    %103 = vector.shape_cast %100 : vector<256x128xf32> to vector<1x256x128xf32>
    tpu.vector_store %arg8[%c0_67, %c0_68, %c0_69], %103 {strides = array<i32>} : memref<1x256x128xf32, #tpu.memory_space<vmem>>, vector<1x256x128xf32>,
    return
  }
  func.func @transform_0(%arg0: i32) -> (i32, i32, i32) {
    %c0_i32 = arith.constant 0 : i32
    %c0_i32_0 = arith.constant 0 : i32
    %c0_i32_1 = arith.constant 0 : i32
    return %arg0, %c0_i32, %c0_i32_0 : i32, i32, i32
  }
  func.func @transform_1(%arg0: i32) -> (i32, i32) {
    %c0_i32 = arith.constant 0 : i32
    %c0_i32_0 = arith.constant 0 : i32
    %c0_i32_1 = arith.constant 0 : i32
    return %c0_i32, %c0_i32_0 : i32, i32
  }
  func.func @transform_2(%arg0: i32) -> (i32, i32) {
    %c0_i32 = arith.constant 0 : i32
    %c0_i32_0 = arith.constant 0 : i32
    %c0_i32_1 = arith.constant 0 : i32
    return %c0_i32, %c0_i32_0 : i32, i32
  }
  func.func @transform_3(%arg0: i32) -> (i32, i32) {
    %c0_i32 = arith.constant 0 : i32
    %c0_i32_0 = arith.constant 0 : i32
    %c0_i32_1 = arith.constant 0 : i32
    return %c0_i32, %c0_i32_0 : i32, i32
  }
  func.func @transform_4(%arg0: i32) -> (i32, i32) {
    %c0_i32 = arith.constant 0 : i32
    %c0_i32_0 = arith.constant 0 : i32
    %c0_i32_1 = arith.constant 0 : i32
    return %c0_i32, %c0_i32_0 : i32, i32
  }
  func.func @transform_5(%arg0: i32) -> (i32, i32) {
    %c0_i32 = arith.constant 0 : i32
    %c0_i32_0 = arith.constant 0 : i32
    %c0_i32_1 = arith.constant 0 : i32
    return %c0_i32, %c0_i32_0 : i32, i32
  }
  func.func @transform_6(%arg0: i32) -> (i32, i32) {
    %c0_i32 = arith.constant 0 : i32
    %c0_i32_0 = arith.constant 0 : i32
    %c0_i32_1 = arith.constant 0 : i32
    return %c0_i32, %c0_i32_0 : i32, i32
  }
  func.func @transform_7(%arg0: i32) -> (i32, i32, i32) {
    %c0_i32 = arith.constant 0 : i32
    %c0_i32_0 = arith.constant 0 : i32
    %c0_i32_1 = arith.constant 0 : i32
    return %arg0, %c0_i32, %c0_i32_0 : i32, i32, i32
  }
}

</mosaic_0001>

<llo_original>
// kernel: tpu_custom_call.1
$region0: #{tpu_custom_call.1}
  #allocation0 [shape = 'u32[]', space=smem, size = 0x4, offset = 0x4, fixed_abs, tag = 'smem constant byte address 0x4 - core index']
  #allocation1 [shape = 'u32[144,128]{1,0:T(1,128)}', space=vmem, size = 0x12000, scoped, tag = 'internal scratch']
  #allocation2 [shape = 'f32[18,32,128]{2,1,0:T(8,128)}', space=vmem, size = 0x48000, scoped, tag = 'scratch operand']
  %s0 = inlined_call_operand.vmem [shape: bf16[2,256,4], index: 0, kind: input, shape index: {}]
  %s1 = inlined_call_operand.vmem [shape: bf16[4,256], index: 1, kind: input, shape index: {}]
  %s2 = inlined_call_operand.vmem [shape: f32[1,256], index: 2, kind: input, shape index: {}]
  %s3 = inlined_call_operand.vmem [shape: f32[9,128], index: 3, kind: input, shape index: {}]
  %s4 = inlined_call_operand.vmem [shape: f32[1,128], index: 4, kind: input, shape index: {}]
  %s5 = inlined_call_operand.vmem [shape: bf16[128,128], index: 5, kind: input, shape index: {}]
  %s6 = inlined_call_operand.vmem [shape: f32[1,128], index: 6, kind: input, shape index: {}]
  %s7 = inlined_call_operand.hbm [shape: f32[2,256,128], index: 7, kind: output, shape index: {}]
  %s8 = sld [smem:[#allocation0]]
  $region61: #{tpu_custom_call.1} parent=0
    _
  %s10 = ssub.s32 1, %s8
  %s11 = scalar_select 0, %s10, %s8
  $region1: #{tpu_custom_call.1} parent=0
    #allocation3 [shape = 'u8[262144]{0}', space=vmem, size = 0x40000, scoped, tag = 'output window, operand 0']
    #allocation4 [shape = 's32[2]{0}', space=sflag, size = 0x8, scoped, tag = 'scoped memory for tpu_custom_call.1']
    %12 = vsyncpa [#allocation4], 0
    %s13 = scalar_lea.sflag [#allocation4], 1
    %14 = vsyncpa %s13, 0
    loop: start=0, step=1, limit=4
    $region2: #{tpu_custom_call.1} parent=1 // loop_pre_header
      _
    $region3: #{tpu_custom_call.1} parent=1 // loop_header
      %s16 = sphi 0, %s20
      %p17 = scmp.ge.s32.totalorder %s16, 4
      %s26 = sphi 0, %s28
      %s29 = sphi 0, %s26
      %s30 = sphi 0, %s29
      %s46 = sphi 0, %s30
      %s50 = sphi 0, %s50
      %s52 = sphi 0, %s50
      %s53 = sphi 0, %s52
      %s67 = sphi 0, %s53
      %s71 = sphi 0, %s71
      %s73 = sphi 0, %s71
      %s74 = sphi 0, %s73
      %s88 = sphi 0, %s74
      %s92 = sphi 0, %s92
      %s94 = sphi 0, %s92
      %s95 = sphi 0, %s94
      %s109 = sphi 0, %s95
      %s113 = sphi 0, %s113
      %s115 = sphi 0, %s113
      %s116 = sphi 0, %s115
      %s130 = sphi 0, %s116
      %s134 = sphi 0, %s134
      %s136 = sphi 0, %s134
      %s137 = sphi 0, %s136
      %s151 = sphi 0, %s137
      %s155 = sphi 0, %s155
      %s157 = sphi 0, %s155
      %s158 = sphi 0, %s157
      %s172 = sphi 0, %s158
      %s178 = sphi 0, %s180
      %s181 = sphi 0, %s178
      %s182 = sphi 0, %s181
      %s198 = sphi 0, %s182
    $region4: #{tpu_custom_call.1} parent=1 // loop_header_branch
      %19 = sbr.rel (%p17) target = $region8
    $region5: #{tpu_custom_call.1} parent=1 // loop_body
      %s21 = ssub.s32 %s16, 1
      %s22 = ssub.s32 %s16, 2
      %s23 = sadd.s32 %s16, 1
      %s24 = ssub.s32 %s16, %s23
      %p25 = scmp.eq.s32.totalorder %s24, 0
      %s27 = sadd.s32 %s26, 1
      %s28 = scalar_select %p25, %s26, %s27
      %p31 = pneg %p25
      %p32 = scmp.eq.s32.totalorder %s16, 1
      %p33 = por %p31, %p32
      %p34 = scmp.ne.s32.totalorder %s26, %s29
      %p35 = scmp.eq.s32.totalorder %s16, 0
      %p36 = por %p34, %p35
      %p37 = scmp.ne.s32.totalorder %s26, %s29
      %p38 = scmp.eq.s32.totalorder %s21, 1
      %p39 = por %p37, %p38
      %p40 = scmp.ne.s32.totalorder %s29, %s30
      %p41 = scmp.eq.s32.totalorder %s21, 0
      %p42 = por %p40, %p41
      %p43 = scmp.ne.s32.totalorder %s29, %s30
      %p44 = scmp.eq.s32.totalorder %s22, 1
      %p45 = por %p43, %p44
      %p47 = scmp.ne.s32.totalorder %s30, %s46
      %p48 = scmp.eq.s32.totalorder %s22, 0
      %p49 = por %p47, %p48
      %s51 = sadd.s32 %s50, 1
      %p54 = scmp.eq.s32.totalorder %s16, 1
      %p55 = scmp.ne.s32.totalorder %s50, %s52
      %p56 = scmp.eq.s32.totalorder %s16, 0
      %p57 = por %p55, %p56
      %p58 = scmp.ne.s32.totalorder %s50, %s52
      %p59 = scmp.eq.s32.totalorder %s21, 1
      %p60 = por %p58, %p59
      %p61 = scmp.ne.s32.totalorder %s52, %s53
      %p62 = scmp.eq.s32.totalorder %s21, 0
      %p63 = por %p61, %p62
      %p64 = scmp.ne.s32.totalorder %s52, %s53
      %p65 = scmp.eq.s32.totalorder %s22, 1
      %p66 = por %p64, %p65
      %p68 = scmp.ne.s32.totalorder %s53, %s67
      %p69 = scmp.eq.s32.totalorder %s22, 0
      %p70 = por %p68, %p69
      %s72 = sadd.s32 %s71, 1
      %p75 = scmp.eq.s32.totalorder %s16, 1
      %p76 = scmp.ne.s32.totalorder %s71, %s73
      %p77 = scmp.eq.s32.totalorder %s16, 0
      %p78 = por %p76, %p77
      %p79 = scmp.ne.s32.totalorder %s71, %s73
      %p80 = scmp.eq.s32.totalorder %s21, 1
      %p81 = por %p79, %p80
      %p82 = scmp.ne.s32.totalorder %s73, %s74
      %p83 = scmp.eq.s32.totalorder %s21, 0
      %p84 = por %p82, %p83
      %p85 = scmp.ne.s32.totalorder %s73, %s74
      %p86 = scmp.eq.s32.totalorder %s22, 1
      %p87 = por %p85, %p86
      %p89 = scmp.ne.s32.totalorder %s74, %s88
      %p90 = scmp.eq.s32.totalorder %s22, 0
      %p91 = por %p89, %p90
      %s93 = sadd.s32 %s92, 1
      %p96 = scmp.eq.s32.totalorder %s16, 1
      %p97 = scmp.ne.s32.totalorder %s92, %s94
      %p98 = scmp.eq.s32.totalorder %s16, 0
      %p99 = por %p97, %p98
      %p100 = scmp.ne.s32.totalorder %s92, %s94
      %p101 = scmp.eq.s32.totalorder %s21, 1
      %p102 = por %p100, %p101
      %p103 = scmp.ne.s32.totalorder %s94, %s95
      %p104 = scmp.eq.s32.totalorder %s21, 0
      %p105 = por %p103, %p104
      %p106 = scmp.ne.s32.totalorder %s94, %s95
      %p107 = scmp.eq.s32.totalorder %s22, 1
      %p108 = por %p106, %p107
      %p110 = scmp.ne.s32.totalorder %s95, %s109
      %p111 = scmp.eq.s32.totalorder %s22, 0
      %p112 = por %p110, %p111
      %s114 = sadd.s32 %s113, 1
      %p117 = scmp.eq.s32.totalorder %s16, 1
      %p118 = scmp.ne.s32.totalorder %s113, %s115
      %p119 = scmp.eq.s32.totalorder %s16, 0
      %p120 = por %p118, %p119
      %p121 = scmp.ne.s32.totalorder %s113, %s115
      %p122 = scmp.eq.s32.totalorder %s21, 1
      %p123 = por %p121, %p122
      %p124 = scmp.ne.s32.totalorder %s115, %s116
      %p125 = scmp.eq.s32.totalorder %s21, 0
      %p126 = por %p124, %p125
      %p127 = scmp.ne.s32.totalorder %s115, %s116
      %p128 = scmp.eq.s32.totalorder %s22, 1
      %p129 = por %p127, %p128
      %p131 = scmp.ne.s32.totalorder %s116, %s130
      %p132 = scmp.eq.s32.totalorder %s22, 0
      %p133 = por %p131, %p132
      %s135 = sadd.s32 %s134, 1
      %p138 = scmp.eq.s32.totalorder %s16, 1
      %p139 = scmp.ne.s32.totalorder %s134, %s136
      %p140 = scmp.eq.s32.totalorder %s16, 0
      %p141 = por %p139, %p140
      %p142 = scmp.ne.s32.totalorder %s134, %s136
      %p143 = scmp.eq.s32.totalorder %s21, 1
      %p144 = por %p142, %p143
      %p145 = scmp.ne.s32.totalorder %s136, %s137
      %p146 = scmp.eq.s32.totalorder %s21, 0
      %p147 = por %p145, %p146
      %p148 = scmp.ne.s32.totalorder %s136, %s137
      %p149 = scmp.eq.s32.totalorder %s22, 1
      %p150 = por %p148, %p149
      %p152 = scmp.ne.s32.totalorder %s137, %s151
      %p153 = scmp.eq.s32.totalorder %s22, 0
      %p154 = por %p152, %p153
      %s156 = sadd.s32 %s155, 1
      %p159 = scmp.eq.s32.totalorder %s16, 1
      %p160 = scmp.ne.s32.totalorder %s155, %s157
      %p161 = scmp.eq.s32.totalorder %s16, 0
      %p162 = por %p160, %p161
      %p163 = scmp.ne.s32.totalorder %s155, %s157
      %p164 = scmp.eq.s32.totalorder %s21, 1
      %p165 = por %p163, %p164
      %p166 = scmp.ne.s32.totalorder %s157, %s158
      %p167 = scmp.eq.s32.totalorder %s21, 0
      %p168 = por %p166, %p167
      %p169 = scmp.ne.s32.totalorder %s157, %s158
      %p170 = scmp.eq.s32.totalorder %s22, 1
      %p171 = por %p169, %p170
      %p173 = scmp.ne.s32.totalorder %s158, %s172
      %p174 = scmp.eq.s32.totalorder %s22, 0
      %p175 = por %p173, %p174
      %s176 = ssub.s32 %s16, %s23
      %p177 = scmp.eq.s32.totalorder %s176, 0
      %s179 = sadd.s32 %s178, 1
      %s180 = scalar_select %p177, %s178, %s179
      %p183 = pneg %p177
      %p184 = scmp.eq.s32.totalorder %s16, 1
      %p185 = por %p183, %p184
      %p186 = scmp.ne.s32.totalorder %s178, %s181
      %p187 = scmp.eq.s32.totalorder %s16, 0
      %p188 = por %p186, %p187
      %p189 = scmp.ne.s32.totalorder %s178, %s181
      %p190 = scmp.eq.s32.totalorder %s21, 1
      %p191 = por %p189, %p190
      %p192 = scmp.ne.s32.totalorder %s181, %s182
      %p193 = scmp.eq.s32.totalorder %s21, 0
      %p194 = por %p192, %p193
      %p195 = scmp.ne.s32.totalorder %s181, %s182
      %p196 = scmp.eq.s32.totalorder %s22, 1
      %p197 = por %p195, %p196
      %p199 = scmp.ne.s32.totalorder %s182, %s198
      %p200 = scmp.eq.s32.totalorder %s22, 0
      %p201 = por %p199, %p200
      %p202 = scmp.le.s32.totalorder 1, %s16
      %p203 = scmp.lt.s32.totalorder %s16, 3
      %p204 = pnand %p202, %p203
      %p205 = pneg %p204
      // Predicated region
      $region9: #{tpu_custom_call.1} parent=5 // pred_check
        _
      $region10: #{tpu_custom_call.1} parent=5 // pred_check_branch
        %207 = sbr.rel (%p204) target = $region12
      $region11: #{tpu_custom_call.1} parent=5 // pred_region
        %s208 = ssub.s32 %s16, 1
        // Predicated region
        $region13: #{tpu_custom_call.1} parent=11 // pred_check
          %p209 = pneg %p63
        $region14: #{tpu_custom_call.1} parent=11 // pred_check_branch
          %211 = sbr.rel (%p209) target = $region16
        $region15: #{tpu_custom_call.1} parent=11 // pred_region
          _
        $region16: #{tpu_custom_call.1} parent=11 // pred_fallthru
          _
        // Predicated region
        $region17: #{tpu_custom_call.1} parent=11 // pred_check
          %p212 = pneg %p84
        $region18: #{tpu_custom_call.1} parent=11 // pred_check_branch
          %214 = sbr.rel (%p212) target = $region20
        $region19: #{tpu_custom_call.1} parent=11 // pred_region
          _
        $region20: #{tpu_custom_call.1} parent=11 // pred_fallthru
          _
        // Predicated region
        $region21: #{tpu_custom_call.1} parent=11 // pred_check
          %p215 = pneg %p105
        $region22: #{tpu_custom_call.1} parent=11 // pred_check_branch
          %217 = sbr.rel (%p215) target = $region24
        $region23: #{tpu_custom_call.1} parent=11 // pred_region
          _
        $region24: #{tpu_custom_call.1} parent=11 // pred_fallthru
          _
        // Predicated region
        $region25: #{tpu_custom_call.1} parent=11 // pred_check
          %p218 = pneg %p126
        $region26: #{tpu_custom_call.1} parent=11 // pred_check_branch
          %220 = sbr.rel (%p218) target = $region28
        $region27: #{tpu_custom_call.1} parent=11 // pred_region
          _
        $region28: #{tpu_custom_call.1} parent=11 // pred_fallthru
          _
        // Predicated region
        $region29: #{tpu_custom_call.1} parent=11 // pred_check
          %p221 = pneg %p147
        $region30: #{tpu_custom_call.1} parent=11 // pred_check_branch
          %223 = sbr.rel (%p221) target = $region32
        $region31: #{tpu_custom_call.1} parent=11 // pred_region
          _
        $region32: #{tpu_custom_call.1} parent=11 // pred_fallthru
          _
        // Predicated region
        $region33: #{tpu_custom_call.1} parent=11 // pred_check
          %p224 = pneg %p168
        $region34: #{tpu_custom_call.1} parent=11 // pred_check_branch
          %226 = sbr.rel (%p224) target = $region36
        $region35: #{tpu_custom_call.1} parent=11 // pred_region
          _
        $region36: #{tpu_custom_call.1} parent=11 // pred_fallthru
          _
      $region12: #{tpu_custom_call.1} parent=5 // pred_fallthru
        _
      %p227 = scmp.lt.s32.totalorder %s16, 2
      // Predicated region
      $region37: #{tpu_custom_call.1} parent=5 // pred_check
        %p228 = pneg %p227
      $region38: #{tpu_custom_call.1} parent=5 // pred_check_branch
        %230 = sbr.rel (%p228) target = $region40
      $region39: #{tpu_custom_call.1} parent=5 // pred_region
        // Predicated region
        $region41: #{tpu_custom_call.1} parent=39 // pred_check
          %p231 = pneg %p36
        $region42: #{tpu_custom_call.1} parent=39 // pred_check_branch
          %233 = sbr.rel (%p231) target = $region44
        $region43: #{tpu_custom_call.1} parent=39 // pred_region
          %p234 = scmp.lt.s32.totalorder %s16, 1
          %s235 = scalar_select %p234, %s16, 1
          %s236 = smul.addr %s235, 32
          %s237 = smul.addr %s236, 4
          %s238 = scalar_lea.vmem %s0, %s237
        $region44: #{tpu_custom_call.1} parent=39 // pred_fallthru
          _
      $region40: #{tpu_custom_call.1} parent=5 // pred_fallthru
        _
      %p239 = scmp.le.s32.totalorder 1, %s16
      %p240 = scmp.lt.s32.totalorder %s16, 3
      %p241 = pnand %p239, %p240
      %p242 = pneg %p241
      // Predicated region
      $region45: #{tpu_custom_call.1} parent=5 // pred_check
        _
      $region46: #{tpu_custom_call.1} parent=5 // pred_check_branch
        %244 = sbr.rel (%p241) target = $region48
      $region47: #{tpu_custom_call.1} parent=5 // pred_region
        %s245 = ssub.s32 %s16, 1
        %p246 = scmp.lt.s32.totalorder %s21, 1
        %s247 = scalar_select %p246, %s21, 1
        %s248 = smul.addr %s247, 32
        %s249 = smul.addr %s248, 4
        %s250 = scalar_lea.vmem %s0, %s249
        %p251 = pneg %p42
        %p252 = pneg %p39
        %p253 = pneg %p63
        %p254 = pneg %p60
        %p255 = pneg %p84
        %p256 = pneg %p81
        %p257 = pneg %p105
        %p258 = pneg %p102
        %p259 = pneg %p126
        %p260 = pneg %p123
        %p261 = pneg %p147
        %p262 = pneg %p144
        %p263 = pneg %p168
        %p264 = pneg %p165
        %p265 = pneg %p194
        %p266 = pneg %p191
        %s267 = sand.u32 %s181, 1
        %s268 = scalar_lea.sflag [#allocation4], %s267
        %s269 = sand.u32 %s181, 1
        %s270 = smul.addr %s269, 256
        %s271 = scalar_lea.vmem [#allocation3], %s270
        %p272 = scmp.lt.s32.totalorder %s21, 1
        %s273 = scalar_select %p272, %s21, 1
        %s274 = smul.addr %s273, 32
        %s275 = smul.addr %s274, 4
        %s276 = scalar_lea.vmem %s0, %s275
        %278 = vst [vmem:[#allocation2] sm:$0xff] 0.0
        %279 = vst [vmem:[#allocation2 + $0x8] sm:$0xff] 0.0
        %280 = vst [vmem:[#allocation2 + $0x10] sm:$0xff] 0.0
        %281 = vst [vmem:[#allocation2 + $0x18] sm:$0xff] 0.0
        %s282 = scalar_lea.vmem [#allocation2], 544
        %283 = vst [vmem:[%s282] sm:$0xff] 0.0
        %284 = vst [vmem:[%s282 + $0x8] sm:$0xff] 0.0
        %285 = vst [vmem:[%s282 + $0x10] sm:$0xff] 0.0
        %286 = vst [vmem:[%s282 + $0x18] sm:$0xff] 0.0
        %287 = vst [vmem:[#allocation2] sm:$0xff] 0.0
        %288 = vst [vmem:[#allocation2 + $0x20] sm:$0xff] 0.0
        %289 = vst [vmem:[#allocation2 + $0x40] sm:$0xff] 0.0
        %290 = vst [vmem:[#allocation2 + $0x60] sm:$0xff] 0.0
        %291 = vst [vmem:[#allocation2 + $0x80] sm:$0xff] 0.0
        %292 = vst [vmem:[#allocation2 + $0xa0] sm:$0xff] 0.0
        %293 = vst [vmem:[#allocation2 + $0xc0] sm:$0xff] 0.0
        %294 = vst [vmem:[#allocation2 + $0xe0] sm:$0xff] 0.0
        %295 = vst [vmem:[#allocation2 + $0x100] sm:$0xff] 0.0
        %296 = vst [vmem:[#allocation2 + $0x120] sm:$0xff] 0.0
        %297 = vst [vmem:[#allocation2 + $0x140] sm:$0xff] 0.0
        %298 = vst [vmem:[#allocation2 + $0x160] sm:$0xff] 0.0
        %299 = vst [vmem:[#allocation2 + $0x180] sm:$0xff] 0.0
        %300 = vst [vmem:[#allocation2 + $0x1a0] sm:$0xff] 0.0
        %301 = vst [vmem:[#allocation2 + $0x1c0] sm:$0xff] 0.0
        %302 = vst [vmem:[#allocation2 + $0x1e0] sm:$0xff] 0.0
        %303 = vst [vmem:[#allocation2 + $0x200] sm:$0xff] 0.0
        %304 = vst [vmem:[#allocation2 + $0x220] sm:$0xff] 0.0
        %305 = vst [vmem:[#allocation2 + $0x18] sm:$0xff] 0.0
        %306 = vst [vmem:[#allocation2 + $0x38] sm:$0xff] 0.0
        %307 = vst [vmem:[#allocation2 + $0x58] sm:$0xff] 0.0
        %308 = vst [vmem:[#allocation2 + $0x78] sm:$0xff] 0.0
        %309 = vst [vmem:[#allocation2 + $0x98] sm:$0xff] 0.0
        %310 = vst [vmem:[#allocation2 + $0xb8] sm:$0xff] 0.0
        %311 = vst [vmem:[#allocation2 + $0xd8] sm:$0xff] 0.0
        %312 = vst [vmem:[#allocation2 + $0xf8] sm:$0xff] 0.0
        %313 = vst [vmem:[#allocation2 + $0x118] sm:$0xff] 0.0
        %314 = vst [vmem:[#allocation2 + $0x138] sm:$0xff] 0.0
        %315 = vst [vmem:[#allocation2 + $0x158] sm:$0xff] 0.0
        %316 = vst [vmem:[#allocation2 + $0x178] sm:$0xff] 0.0
        %317 = vst [vmem:[#allocation2 + $0x198] sm:$0xff] 0.0
        %318 = vst [vmem:[#allocation2 + $0x1b8] sm:$0xff] 0.0
        %319 = vst [vmem:[#allocation2 + $0x1d8] sm:$0xff] 0.0
        %320 = vst [vmem:[#allocation2 + $0x1f8] sm:$0xff] 0.0
        %321 = vst [vmem:[#allocation2 + $0x218] sm:$0xff] 0.0
        %322 = vst [vmem:[#allocation2 + $0x238] sm:$0xff] 0.0
        %v323 = vld [vmem:[%s276] sm:$0xf]
        %v324 = vld [vmem:[%s276 + $0x4] sm:$0xf]
        %v325 = vld [vmem:[%s276 + $0x8] sm:$0xf]
        %v326 = vld [vmem:[%s276 + $0xc] sm:$0xf]
        %v327 = vld [vmem:[%s276 + $0x10] sm:$0xf]
        %v328 = vld [vmem:[%s276 + $0x14] sm:$0xf]
        %v329 = vld [vmem:[%s276 + $0x18] sm:$0xf]
        %v330 = vld [vmem:[%s276 + $0x1c] sm:$0xf]
        %v331 = vld [vmem:[%s276 + $0x20] sm:$0xf]
        %v332 = vld [vmem:[%s276 + $0x24] sm:$0xf]
        %v333 = vld [vmem:[%s276 + $0x28] sm:$0xf]
        %v334 = vld [vmem:[%s276 + $0x2c] sm:$0xf]
        %v335 = vld [vmem:[%s276 + $0x30] sm:$0xf]
        %v336 = vld [vmem:[%s276 + $0x34] sm:$0xf]
        %v337 = vld [vmem:[%s276 + $0x38] sm:$0xf]
        %v338 = vld [vmem:[%s276 + $0x3c] sm:$0xf]
        %v339 = vld [vmem:[%s276 + $0x40] sm:$0xf]
        %v340 = vld [vmem:[%s276 + $0x44] sm:$0xf]
        %v341 = vld [vmem:[%s276 + $0x48] sm:$0xf]
        %v342 = vld [vmem:[%s276 + $0x4c] sm:$0xf]
        %v343 = vld [vmem:[%s276 + $0x50] sm:$0xf]
        %v344 = vld [vmem:[%s276 + $0x54] sm:$0xf]
        %v345 = vld [vmem:[%s276 + $0x58] sm:$0xf]
        %v346 = vld [vmem:[%s276 + $0x5c] sm:$0xf]
        %v347 = vld [vmem:[%s276 + $0x60] sm:$0xf]
        %v348 = vld [vmem:[%s276 + $0x64] sm:$0xf]
        %v349 = vld [vmem:[%s276 + $0x68] sm:$0xf]
        %v350 = vld [vmem:[%s276 + $0x6c] sm:$0xf]
        %v351 = vld [vmem:[%s276 + $0x70] sm:$0xf]
        %v352 = vld [vmem:[%s276 + $0x74] sm:$0xf]
        %v353 = vld [vmem:[%s276 + $0x78] sm:$0xf]
        %v354 = vld [vmem:[%s276 + $0x7c] sm:$0xf]
        %v355 = vld [vmem:[%s1] sm:$0xf]
        %v356 = vld [vmem:[%s2] sm:$0x3]
        %v358 = vlaneseq
        %v359 = vshrl.u32 %v358, 7
        %v360 = vsub.s32 0, %v359
        %v361 = vrot.slane %v356, %v360
        %v362 = vlaneseq
        %v363 = vshrl.u32 %v362, 7
        %v364 = vsub.s32 1, %v363
        %v365 = vrot.slane %v356, %v364
        %v400 = vunpack.c.l.b16 %v323
        %v401 = vunpack.c.l.b16 %v324
        %v402 = vunpack.c.l.b16 %v325
        %v403 = vunpack.c.l.b16 %v326
        %v404 = vunpack.c.l.b16 %v327
        %v405 = vunpack.c.l.b16 %v328
        %v406 = vunpack.c.l.b16 %v329
        %v407 = vunpack.c.l.b16 %v330
        %v408 = vunpack.c.l.b16 %v331
        %v409 = vunpack.c.l.b16 %v332
        %v410 = vunpack.c.l.b16 %v333
        %v411 = vunpack.c.l.b16 %v334
        %v412 = vunpack.c.l.b16 %v335
        %v413 = vunpack.c.l.b16 %v336
        %v414 = vunpack.c.l.b16 %v337
        %v415 = vunpack.c.l.b16 %v338
        %v416 = vunpack.c.l.b16 %v339
        %v417 = vunpack.c.l.b16 %v340
        %v418 = vunpack.c.l.b16 %v341
        %v419 = vunpack.c.l.b16 %v342
        %v420 = vunpack.c.l.b16 %v343
        %v421 = vunpack.c.l.b16 %v344
        %v422 = vunpack.c.l.b16 %v345
        %v423 = vunpack.c.l.b16 %v346
        %v424 = vunpack.c.l.b16 %v347
        %v425 = vunpack.c.l.b16 %v348
        %v426 = vunpack.c.l.b16 %v349
        %v427 = vunpack.c.l.b16 %v350
        %v428 = vunpack.c.l.b16 %v351
        %v429 = vunpack.c.l.b16 %v352
        %v430 = vunpack.c.l.b16 %v353
        %v431 = vunpack.c.l.b16 %v354
        %v432 = vpack.c.b16 %v401, %v400
        %v433 = vpack.c.b16 %v403, %v402
        %v434 = vpack.c.b16 %v405, %v404
        %v435 = vpack.c.b16 %v407, %v406
        %v436 = vpack.c.b16 %v409, %v408
        %v437 = vpack.c.b16 %v411, %v410
        %v438 = vpack.c.b16 %v413, %v412
        %v439 = vpack.c.b16 %v415, %v414
        %v440 = vpack.c.b16 %v417, %v416
        %v441 = vpack.c.b16 %v419, %v418
        %v442 = vpack.c.b16 %v421, %v420
        %v443 = vpack.c.b16 %v423, %v422
        %v444 = vpack.c.b16 %v425, %v424
        %v445 = vpack.c.b16 %v427, %v426
        %v446 = vpack.c.b16 %v429, %v428
        %v447 = vpack.c.b16 %v431, %v430
        %v450 = vunpack.c.l.s4 1983009808
        %v451 = vunpack.c.0.s8 %v450
        %v452 = vlaneseq
        %v453 = vshrl.u32 %v452, 7
        %v454 = vsub.s32 %v451, %v453
        %v455 = vrot.slane %v355, %v454
        %v456 = vcombine.high %v455, %v455
        %vm457 = vcmask 31744
        %v459 = vsel %vm457, %v432, 0
        %v462 = vsel %vm457, %v433, 0
        %v465 = vsel %vm457, %v434, 0
        %v468 = vsel %vm457, %v435, 0
        %v471 = vsel %vm457, %v436, 0
        %v474 = vsel %vm457, %v437, 0
        %v477 = vsel %vm457, %v438, 0
        %v480 = vsel %vm457, %v439, 0
        %v483 = vsel %vm457, %v440, 0
        %v486 = vsel %vm457, %v441, 0
        %v489 = vsel %vm457, %v442, 0
        %v492 = vsel %vm457, %v443, 0
        %v495 = vsel %vm457, %v444, 0
        %v498 = vsel %vm457, %v445, 0
        %v501 = vsel %vm457, %v446, 0
        %v504 = vsel %vm457, %v447, 0
        %vm506 = vcmask 1041408
        %v508 = vsel %vm506, %v455, 0
        %v511 = vsel %vm506, %v456, 0
        %513 = vmatprep.subr.bf16.mxu0 %v511
        %514 = vmatpush1.bf16.msra.mxu0 %v508
        %515 = vmatprep.subr.bf16.mxu0 0
        %516 = vmatpush1.bf16.msra.mxu0 0
        %517 = vmatprep.subr.bf16.mxu0 0
        %518 = vmatpush1.bf16.msra.mxu0 0
        %519 = vmatprep.subr.bf16.mxu0 0
        %520 = vmatpush1.bf16.msra.mxu0 0
        %521 = vmatprep.subr.bf16.mxu0 0
        %522 = vmatpush1.bf16.msra.mxu0 0
        %523 = vmatprep.subr.bf16.mxu0 0
        %524 = vmatpush1.bf16.msra.mxu0 0
        %525 = vmatprep.subr.bf16.mxu0 0
        %526 = vmatpush1.bf16.msra.mxu0 0
        %527 = vmatprep.subr.bf16.mxu0 0
        %528 = vmatpush1.bf16.msra.mxu0 0
        %529 = vmatprep.subr.bf16.mxu0 0
        %530 = vmatpush1.bf16.msra.mxu0 0
        %531 = vmatprep.subr.bf16.mxu0 0
        %532 = vmatpush1.bf16.msra.mxu0 0
        %533 = vmatprep.subr.bf16.mxu0 0
        %534 = vmatpush1.bf16.msra.mxu0 0
        %535 = vmatprep.subr.bf16.mxu0 0
        %536 = vmatpush1.bf16.msra.mxu0 0
        %537 = vmatprep.subr.bf16.mxu0 0
        %538 = vmatpush1.bf16.msra.mxu0 0
        %539 = vmatprep.subr.bf16.mxu0 0
        %540 = vmatpush1.bf16.msra.mxu0 0
        %541 = vmatprep.subr.bf16.mxu0 0
        %542 = vmatpush1.bf16.msra.mxu0 0
        %543 = vmatprep.subr.bf16.mxu0 0
        %544 = vmatpush1.bf16.msra.mxu0 0
        %545 = vmatprep.mubr.bf16.mxu0 0
        %546 = vmatmul.mubr.bf16.gmra.mrb[0].mxu0 %v459
        %v547 = vpop.f32.mrb[0].mxu0
        %v548 = vadd.f32 %v361, %v547
        %v549 = vpop.f32.mrb[0].mxu0
        %v550 = vadd.f32 %v365, %v549
        %v551 = vpop.f32.mrb[0].mxu0
        %v552 = vadd.f32 %v361, %v551
        %v553 = vpop.f32.mrb[0].mxu0
        %v554 = vadd.f32 %v365, %v553
        %555 = vmatprep.mubr.bf16.mxu0 0
        %556 = vmatmul.mubr.bf16.gmra.mrb[0].mxu0 %v462
        %v557 = vpop.f32.mrb[0].mxu0
        %v558 = vadd.f32 %v361, %v557
        %v559 = vpop.f32.mrb[0].mxu0
        %v560 = vadd.f32 %v365, %v559
        %v561 = vpop.f32.mrb[0].mxu0
        %v562 = vadd.f32 %v361, %v561
        %v563 = vpop.f32.mrb[0].mxu0
        %v564 = vadd.f32 %v365, %v563
        %565 = vmatprep.mubr.bf16.mxu0 0
        %566 = vmatmul.mubr.bf16.gmra.mrb[0].mxu0 %v465
        %v567 = vpop.f32.mrb[0].mxu0
        %v568 = vadd.f32 %v361, %v567
        %v569 = vpop.f32.mrb[0].mxu0
        %v570 = vadd.f32 %v365, %v569
        %v571 = vpop.f32.mrb[0].mxu0
        %v572 = vadd.f32 %v361, %v571
        %v573 = vpop.f32.mrb[0].mxu0
        %v574 = vadd.f32 %v365, %v573
        %575 = vmatprep.mubr.bf16.mxu0 0
        %576 = vmatmul.mubr.bf16.gmra.mrb[0].mxu0 %v468
        %v577 = vpop.f32.mrb[0].mxu0
        %v578 = vadd.f32 %v361, %v577
        %v579 = vpop.f32.mrb[0].mxu0
        %v580 = vadd.f32 %v365, %v579
        %v581 = vpop.f32.mrb[0].mxu0
        %v582 = vadd.f32 %v361, %v581
        %v583 = vpop.f32.mrb[0].mxu0
        %v584 = vadd.f32 %v365, %v583
        %585 = vmatprep.mubr.bf16.mxu0 0
        %586 = vmatmul.mubr.bf16.gmra.mrb[0].mxu0 %v471
        %v587 = vpop.f32.mrb[0].mxu0
        %v588 = vadd.f32 %v361, %v587
        %v589 = vpop.f32.mrb[0].mxu0
        %v590 = vadd.f32 %v365, %v589
        %v591 = vpop.f32.mrb[0].mxu0
        %v592 = vadd.f32 %v361, %v591
        %v593 = vpop.f32.mrb[0].mxu0
        %v594 = vadd.f32 %v365, %v593
        %595 = vmatprep.mubr.bf16.mxu0 0
        %596 = vmatmul.mubr.bf16.gmra.mrb[0].mxu0 %v474
        %v597 = vpop.f32.mrb[0].mxu0
        %v598 = vadd.f32 %v361, %v597
        %v599 = vpop.f32.mrb[0].mxu0
        %v600 = vadd.f32 %v365, %v599
        %v601 = vpop.f32.mrb[0].mxu0
        %v602 = vadd.f32 %v361, %v601
        %v603 = vpop.f32.mrb[0].mxu0
        %v604 = vadd.f32 %v365, %v603
        %605 = vmatprep.mubr.bf16.mxu0 0
        %606 = vmatmul.mubr.bf16.gmra.mrb[0].mxu0 %v477
        %v607 = vpop.f32.mrb[0].mxu0
        %v608 = vadd.f32 %v361, %v607
        %v609 = vpop.f32.mrb[0].mxu0
        %v610 = vadd.f32 %v365, %v609
        %v611 = vpop.f32.mrb[0].mxu0
        %v612 = vadd.f32 %v361, %v611
        %v613 = vpop.f32.mrb[0].mxu0
        %v614 = vadd.f32 %v365, %v613
        %615 = vmatprep.mubr.bf16.mxu0 0
        %616 = vmatmul.mubr.bf16.gmra.mrb[0].mxu0 %v480
        %v617 = vpop.f32.mrb[0].mxu0
        %v618 = vadd.f32 %v361, %v617
        %v619 = vpop.f32.mrb[0].mxu0
        %v620 = vadd.f32 %v365, %v619
        %v621 = vpop.f32.mrb[0].mxu0
        %v622 = vadd.f32 %v361, %v621
        %v623 = vpop.f32.mrb[0].mxu0
        %v624 = vadd.f32 %v365, %v623
        %625 = vmatprep.mubr.bf16.mxu0 0
        %626 = vmatmul.mubr.bf16.gmra.mrb[0].mxu0 %v483
        %v627 = vpop.f32.mrb[0].mxu0
        %v628 = vadd.f32 %v361, %v627
        %v629 = vpop.f32.mrb[0].mxu0
        %v630 = vadd.f32 %v365, %v629
        %v631 = vpop.f32.mrb[0].mxu0
        %v632 = vadd.f32 %v361, %v631
        %v633 = vpop.f32.mrb[0].mxu0
        %v634 = vadd.f32 %v365, %v633
        %635 = vmatprep.mubr.bf16.mxu0 0
        %636 = vmatmul.mubr.bf16.gmra.mrb[0].mxu0 %v486
        %v637 = vpop.f32.mrb[0].mxu0
        %v638 = vadd.f32 %v361, %v637
        %v639 = vpop.f32.mrb[0].mxu0
        %v640 = vadd.f32 %v365, %v639
        %v641 = vpop.f32.mrb[0].mxu0
        %v642 = vadd.f32 %v361, %v641
        %v643 = vpop.f32.mrb[0].mxu0
        %v644 = vadd.f32 %v365, %v643
        %645 = vmatprep.mubr.bf16.mxu0 0
        %646 = vmatmul.mubr.bf16.gmra.mrb[0].mxu0 %v489
        %v647 = vpop.f32.mrb[0].mxu0
        %v648 = vadd.f32 %v361, %v647
        %v649 = vpop.f32.mrb[0].mxu0
        %v650 = vadd.f32 %v365, %v649
        %v651 = vpop.f32.mrb[0].mxu0
        %v652 = vadd.f32 %v361, %v651
        %v653 = vpop.f32.mrb[0].mxu0
        %v654 = vadd.f32 %v365, %v653
        %655 = vmatprep.mubr.bf16.mxu0 0
        %656 = vmatmul.mubr.bf16.gmra.mrb[0].mxu0 %v492
        %v657 = vpop.f32.mrb[0].mxu0
        %v658 = vadd.f32 %v361, %v657
        %v659 = vpop.f32.mrb[0].mxu0
        %v660 = vadd.f32 %v365, %v659
        %v661 = vpop.f32.mrb[0].mxu0
        %v662 = vadd.f32 %v361, %v661
        %v663 = vpop.f32.mrb[0].mxu0
        %v664 = vadd.f32 %v365, %v663
        %665 = vmatprep.mubr.bf16.mxu0 0
        %666 = vmatmul.mubr.bf16.gmra.mrb[0].mxu0 %v495
        %v667 = vpop.f32.mrb[0].mxu0
        %v668 = vadd.f32 %v361, %v667
        %v669 = vpop.f32.mrb[0].mxu0
        %v670 = vadd.f32 %v365, %v669
        %v671 = vpop.f32.mrb[0].mxu0
        %v672 = vadd.f32 %v361, %v671
        %v673 = vpop.f32.mrb[0].mxu0
        %v674 = vadd.f32 %v365, %v673
        %675 = vmatprep.mubr.bf16.mxu0 0
        %676 = vmatmul.mubr.bf16.gmra.mrb[0].mxu0 %v498
        %v677 = vpop.f32.mrb[0].mxu0
        %v678 = vadd.f32 %v361, %v677
        %v679 = vpop.f32.mrb[0].mxu0
        %v680 = vadd.f32 %v365, %v679
        %v681 = vpop.f32.mrb[0].mxu0
        %v682 = vadd.f32 %v361, %v681
        %v683 = vpop.f32.mrb[0].mxu0
        %v684 = vadd.f32 %v365, %v683
        %685 = vmatprep.mubr.bf16.mxu0 0
        %686 = vmatmul.mubr.bf16.gmra.mrb[0].mxu0 %v501
        %v687 = vpop.f32.mrb[0].mxu0
        %v688 = vadd.f32 %v361, %v687
        %v689 = vpop.f32.mrb[0].mxu0
        %v690 = vadd.f32 %v365, %v689
        %v691 = vpop.f32.mrb[0].mxu0
        %v692 = vadd.f32 %v361, %v691
        %v693 = vpop.f32.mrb[0].mxu0
        %v694 = vadd.f32 %v365, %v693
        %695 = vmatprep.mubr.bf16.mxu0 0
        %696 = vmatmul.mubr.bf16.gmra.mrb[0].mxu0 %v504
        %v697 = vpop.f32.mrb[0].mxu0
        %v698 = vadd.f32 %v361, %v697
        %v699 = vpop.f32.mrb[0].mxu0
        %v700 = vadd.f32 %v365, %v699
        %v701 = vpop.f32.mrb[0].mxu0
        %v702 = vadd.f32 %v361, %v701
        %v703 = vpop.f32.mrb[0].mxu0
        %v704 = vadd.f32 %v365, %v703
        %705 = vdwg.mxu0
        %v706 = vmax.f32 %v548, 0.0
        %v707 = vmax.f32 %v552, 0.0
        %v708 = vmax.f32 %v558, 0.0
        %v709 = vmax.f32 %v562, 0.0
        %v710 = vmax.f32 %v568, 0.0
        %v711 = vmax.f32 %v572, 0.0
        %v712 = vmax.f32 %v578, 0.0
        %v713 = vmax.f32 %v582, 0.0
        %v714 = vmax.f32 %v588, 0.0
        %v715 = vmax.f32 %v592, 0.0
        %v716 = vmax.f32 %v598, 0.0
        %v717 = vmax.f32 %v602, 0.0
        %v718 = vmax.f32 %v608, 0.0
        %v719 = vmax.f32 %v612, 0.0
        %v720 = vmax.f32 %v618, 0.0
        %v721 = vmax.f32 %v622, 0.0
        %v722 = vmax.f32 %v628, 0.0
        %v723 = vmax.f32 %v632, 0.0
        %v724 = vmax.f32 %v638, 0.0
        %v725 = vmax.f32 %v642, 0.0
        %v726 = vmax.f32 %v648, 0.0
        %v727 = vmax.f32 %v652, 0.0
        %v728 = vmax.f32 %v658, 0.0
        %v729 = vmax.f32 %v662, 0.0
        %v730 = vmax.f32 %v668, 0.0
        %v731 = vmax.f32 %v672, 0.0
        %v732 = vmax.f32 %v678, 0.0
        %v733 = vmax.f32 %v682, 0.0
        %v734 = vmax.f32 %v688, 0.0
        %v735 = vmax.f32 %v692, 0.0
        %v736 = vmax.f32 %v698, 0.0
        %v737 = vmax.f32 %v702, 0.0
        %s738 = scalar_lea.vmem [#allocation2], 32
        %739 = vst [vmem:[%s738 + $0x8] sm:$0xff] %v706
        %740 = vst [vmem:[%s738 + $0x10] sm:$0xff] %v707
        %741 = vst [vmem:[%s738 + $0x28] sm:$0xff] %v708
        %742 = vst [vmem:[%s738 + $0x30] sm:$0xff] %v709
        %743 = vst [vmem:[%s738 + $0x48] sm:$0xff] %v710
        %744 = vst [vmem:[%s738 + $0x50] sm:$0xff] %v711
        %745 = vst [vmem:[%s738 + $0x68] sm:$0xff] %v712
        %746 = vst [vmem:[%s738 + $0x70] sm:$0xff] %v713
        %747 = vst [vmem:[%s738 + $0x88] sm:$0xff] %v714
        %748 = vst [vmem:[%s738 + $0x90] sm:$0xff] %v715
        %749 = vst [vmem:[%s738 + $0xa8] sm:$0xff] %v716
        %750 = vst [vmem:[%s738 + $0xb0] sm:$0xff] %v717
        %751 = vst [vmem:[%s738 + $0xc8] sm:$0xff] %v718
        %752 = vst [vmem:[%s738 + $0xd0] sm:$0xff] %v719
        %753 = vst [vmem:[%s738 + $0xe8] sm:$0xff] %v720
        %754 = vst [vmem:[%s738 + $0xf0] sm:$0xff] %v721
        %755 = vst [vmem:[%s738 + $0x108] sm:$0xff] %v722
        %756 = vst [vmem:[%s738 + $0x110] sm:$0xff] %v723
        %757 = vst [vmem:[%s738 + $0x128] sm:$0xff] %v724
        %758 = vst [vmem:[%s738 + $0x130] sm:$0xff] %v725
        %759 = vst [vmem:[%s738 + $0x148] sm:$0xff] %v726
        %760 = vst [vmem:[%s738 + $0x150] sm:$0xff] %v727
        %761 = vst [vmem:[%s738 + $0x168] sm:$0xff] %v728
        %762 = vst [vmem:[%s738 + $0x170] sm:$0xff] %v729
        %763 = vst [vmem:[%s738 + $0x188] sm:$0xff] %v730
        %764 = vst [vmem:[%s738 + $0x190] sm:$0xff] %v731
        %765 = vst [vmem:[%s738 + $0x1a8] sm:$0xff] %v732
        %766 = vst [vmem:[%s738 + $0x1b0] sm:$0xff] %v733
        %767 = vst [vmem:[%s738 + $0x1c8] sm:$0xff] %v734
        %768 = vst [vmem:[%s738 + $0x1d0] sm:$0xff] %v735
        %769 = vst [vmem:[%s738 + $0x1e8] sm:$0xff] %v736
        %770 = vst [vmem:[%s738 + $0x1f0] sm:$0xff] %v737
        %v771 = vld [vmem:[#allocation2 + $0x7] sm:$0xff]
        %v772 = vld [vmem:[#allocation2 + $0xf] sm:$0xff]
        %v773 = vld [vmem:[#allocation2 + $0x27] sm:$0xff]
        %v774 = vld [vmem:[#allocation2 + $0x2f] sm:$0xff]
        %v775 = vld [vmem:[#allocation2 + $0x47] sm:$0xff]
        %v776 = vld [vmem:[#allocation2 + $0x4f] sm:$0xff]
        %v777 = vld [vmem:[#allocation2 + $0x67] sm:$0xff]
        %v778 = vld [vmem:[#allocation2 + $0x6f] sm:$0xff]
        %v779 = vld [vmem:[#allocation2 + $0x87] sm:$0xff]
        %v780 = vld [vmem:[#allocation2 + $0x8f] sm:$0xff]
        %v781 = vld [vmem:[#allocation2 + $0xa7] sm:$0xff]
        %v782 = vld [vmem:[#allocation2 + $0xaf] sm:$0xff]
        %v783 = vld [vmem:[#allocation2 + $0xc7] sm:$0xff]
        %v784 = vld [vmem:[#allocation2 + $0xcf] sm:$0xff]
        %v785 = vld [vmem:[#allocation2 + $0xe7] sm:$0xff]
        %v786 = vld [vmem:[#allocation2 + $0xef] sm:$0xff]
        %v787 = vld [vmem:[#allocation2 + $0x107] sm:$0xff]
        %v788 = vld [vmem:[#allocation2 + $0x10f] sm:$0xff]
        %v789 = vld [vmem:[#allocation2 + $0x127] sm:$0xff]
        %v790 = vld [vmem:[#allocation2 + $0x12f] sm:$0xff]
        %v791 = vld [vmem:[#allocation2 + $0x147] sm:$0xff]
        %v792 = vld [vmem:[#allocation2 + $0x14f] sm:$0xff]
        %v793 = vld [vmem:[#allocation2 + $0x167] sm:$0xff]
        %v794 = vld [vmem:[#allocation2 + $0x16f] sm:$0xff]
        %v795 = vld [vmem:[#allocation2 + $0x187] sm:$0xff]
        %v796 = vld [vmem:[#allocation2 + $0x18f] sm:$0xff]
        %v797 = vld [vmem:[#allocation2 + $0x1a7] sm:$0xff]
        %v798 = vld [vmem:[#allocation2 + $0x1af] sm:$0xff]
        %v799 = vld [vmem:[#allocation2 + $0x1c7] sm:$0xff]
        %v800 = vld [vmem:[#allocation2 + $0x1cf] sm:$0xff]
        %v801 = vld [vmem:[#allocation2 + $0x1e7] sm:$0xff]
        %v802 = vld [vmem:[#allocation2 + $0x1ef] sm:$0xff]
        %v803 = vld [vmem:[%s3] sm:$0x1]
        %v804 = vlaneseq
        %v805 = vshrl.u32 %v804, 7
        %v806 = vsub.s32 0, %v805
        %v807 = vrot.slane %v803, %v806
        %v808 = vmul.f32 %v771, %v807
        %v809 = vmul.f32 %v772, %v807
        %v810 = vmul.f32 %v773, %v807
        %v811 = vmul.f32 %v774, %v807
        %v812 = vmul.f32 %v775, %v807
        %v813 = vmul.f32 %v776, %v807
        %v814 = vmul.f32 %v777, %v807
        %v815 = vmul.f32 %v778, %v807
        %v816 = vmul.f32 %v779, %v807
        %v817 = vmul.f32 %v780, %v807
        %v818 = vmul.f32 %v781, %v807
        %v819 = vmul.f32 %v782, %v807
        %v820 = vmul.f32 %v783, %v807
        %v821 = vmul.f32 %v784, %v807
        %v822 = vmul.f32 %v785, %v807
        %v823 = vmul.f32 %v786, %v807
        %v824 = vmul.f32 %v787, %v807
        %v825 = vmul.f32 %v788, %v807
        %v826 = vmul.f32 %v789, %v807
        %v827 = vmul.f32 %v790, %v807
        %v828 = vmul.f32 %v791, %v807
        %v829 = vmul.f32 %v792, %v807
        %v830 = vmul.f32 %v793, %v807
        %v831 = vmul.f32 %v794, %v807
        %v832 = vmul.f32 %v795, %v807
        %v833 = vmul.f32 %v796, %v807
        %v834 = vmul.f32 %v797, %v807
        %v835 = vmul.f32 %v798, %v807
        %v836 = vmul.f32 %v799, %v807
        %v837 = vmul.f32 %v800, %v807
        %v838 = vmul.f32 %v801, %v807
        %v839 = vmul.f32 %v802, %v807
        %v840 = vadd.f32 %v808, 0.0
        %v841 = vadd.f32 %v809, 0.0
        %v842 = vadd.f32 %v810, 0.0
        %v843 = vadd.f32 %v811, 0.0
        %v844 = vadd.f32 %v812, 0.0
        %v845 = vadd.f32 %v813, 0.0
        %v846 = vadd.f32 %v814, 0.0
        %v847 = vadd.f32 %v815, 0.0
        %v848 = vadd.f32 %v816, 0.0
        %v849 = vadd.f32 %v817, 0.0
        %v850 = vadd.f32 %v818, 0.0
        %v851 = vadd.f32 %v819, 0.0
        %v852 = vadd.f32 %v820, 0.0
        %v853 = vadd.f32 %v821, 0.0
        %v854 = vadd.f32 %v822, 0.0
        %v855 = vadd.f32 %v823, 0.0
        %v856 = vadd.f32 %v824, 0.0
        %v857 = vadd.f32 %v825, 0.0
        %v858 = vadd.f32 %v826, 0.0
        %v859 = vadd.f32 %v827, 0.0
        %v860 = vadd.f32 %v828, 0.0
        %v861 = vadd.f32 %v829, 0.0
        %v862 = vadd.f32 %v830, 0.0
        %v863 = vadd.f32 %v831, 0.0
        %v864 = vadd.f32 %v832, 0.0
        %v865 = vadd.f32 %v833, 0.0
        %v866 = vadd.f32 %v834, 0.0
        %v867 = vadd.f32 %v835, 0.0
        %v868 = vadd.f32 %v836, 0.0
        %v869 = vadd.f32 %v837, 0.0
        %v870 = vadd.f32 %v838, 0.0
        %v871 = vadd.f32 %v839, 0.0
        %v872 = vld [vmem:[#allocation2 + $0x8] sm:$0xff]
        %v873 = vld [vmem:[#allocation2 + $0x10] sm:$0xff]
        %v874 = vld [vmem:[#allocation2 + $0x28] sm:$0xff]
        %v875 = vld [vmem:[#allocation2 + $0x30] sm:$0xff]
        %v876 = vld [vmem:[#allocation2 + $0x48] sm:$0xff]
        %v877 = vld [vmem:[#allocation2 + $0x50] sm:$0xff]
        %v878 = vld [vmem:[#allocation2 + $0x68] sm:$0xff]
        %v879 = vld [vmem:[#allocation2 + $0x70] sm:$0xff]
        %v880 = vld [vmem:[#allocation2 + $0x88] sm:$0xff]
        %v881 = vld [vmem:[#allocation2 + $0x90] sm:$0xff]
        %v882 = vld [vmem:[#allocation2 + $0xa8] sm:$0xff]
        %v883 = vld [vmem:[#allocation2 + $0xb0] sm:$0xff]
        %v884 = vld [vmem:[#allocation2 + $0xc8] sm:$0xff]
        %v885 = vld [vmem:[#allocation2 + $0xd0] sm:$0xff]
        %v886 = vld [vmem:[#allocation2 + $0xe8] sm:$0xff]
        %v887 = vld [vmem:[#allocation2 + $0xf0] sm:$0xff]
        %v888 = vld [vmem:[#allocation2 + $0x108] sm:$0xff]
        %v889 = vld [vmem:[#allocation2 + $0x110] sm:$0xff]
        %v890 = vld [vmem:[#allocation2 + $0x128] sm:$0xff]
        %v891 = vld [vmem:[#allocation2 + $0x130] sm:$0xff]
        %v892 = vld [vmem:[#allocation2 + $0x148] sm:$0xff]
        %v893 = vld [vmem:[#allocation2 + $0x150] sm:$0xff]
        %v894 = vld [vmem:[#allocation2 + $0x168] sm:$0xff]
        %v895 = vld [vmem:[#allocation2 + $0x170] sm:$0xff]
        %v896 = vld [vmem:[#allocation2 + $0x188] sm:$0xff]
        %v897 = vld [vmem:[#allocation2 + $0x190] sm:$0xff]
        %v898 = vld [vmem:[#allocation2 + $0x1a8] sm:$0xff]
        %v899 = vld [vmem:[#allocation2 + $0x1b0] sm:$0xff]
        %v900 = vld [vmem:[#allocation2 + $0x1c8] sm:$0xff]
        %v901 = vld [vmem:[#allocation2 + $0x1d0] sm:$0xff]
        %v902 = vld [vmem:[#allocation2 + $0x1e8] sm:$0xff]
        %v903 = vld [vmem:[#allocation2 + $0x1f0] sm:$0xff]
        %v904 = vld [vmem:[%s3 + $0x1] sm:$0x1]
        %v905 = vlaneseq
        %v906 = vshrl.u32 %v905, 7
        %v907 = vsub.s32 0, %v906
        %v908 = vrot.slane %v904, %v907
        %v909 = vmul.f32 %v872, %v908
        %v910 = vmul.f32 %v873, %v908
        %v911 = vmul.f32 %v874, %v908
        %v912 = vmul.f32 %v875, %v908
        %v913 = vmul.f32 %v876, %v908
        %v914 = vmul.f32 %v877, %v908
        %v915 = vmul.f32 %v878, %v908
        %v916 = vmul.f32 %v879, %v908
        %v917 = vmul.f32 %v880, %v908
        %v918 = vmul.f32 %v881, %v908
        %v919 = vmul.f32 %v882, %v908
        %v920 = vmul.f32 %v883, %v908
        %v921 = vmul.f32 %v884, %v908
        %v922 = vmul.f32 %v885, %v908
        %v923 = vmul.f32 %v886, %v908
        %v924 = vmul.f32 %v887, %v908
        %v925 = vmul.f32 %v888, %v908
        %v926 = vmul.f32 %v889, %v908
        %v927 = vmul.f32 %v890, %v908
        %v928 = vmul.f32 %v891, %v908
        %v929 = vmul.f32 %v892, %v908
        %v930 = vmul.f32 %v893, %v908
        %v931 = vmul.f32 %v894, %v908
        %v932 = vmul.f32 %v895, %v908
        %v933 = vmul.f32 %v896, %v908
        %v934 = vmul.f32 %v897, %v908
        %v935 = vmul.f32 %v898, %v908
        %v936 = vmul.f32 %v899, %v908
        %v937 = vmul.f32 %v900, %v908
        %v938 = vmul.f32 %v901, %v908
        %v939 = vmul.f32 %v902, %v908
        %v940 = vmul.f32 %v903, %v908
        %v941 = vadd.f32 %v840, %v909
        %v942 = vadd.f32 %v841, %v910
        %v943 = vadd.f32 %v842, %v911
        %v944 = vadd.f32 %v843, %v912
        %v945 = vadd.f32 %v844, %v913
        %v946 = vadd.f32 %v845, %v914
        %v947 = vadd.f32 %v846, %v915
        %v948 = vadd.f32 %v847, %v916
        %v949 = vadd.f32 %v848, %v917
        %v950 = vadd.f32 %v849, %v918
        %v951 = vadd.f32 %v850, %v919
        %v952 = vadd.f32 %v851, %v920
        %v953 = vadd.f32 %v852, %v921
        %v954 = vadd.f32 %v853, %v922
        %v955 = vadd.f32 %v854, %v923
        %v956 = vadd.f32 %v855, %v924
        %v957 = vadd.f32 %v856, %v925
        %v958 = vadd.f32 %v857, %v926
        %v959 = vadd.f32 %v858, %v927
        %v960 = vadd.f32 %v859, %v928
        %v961 = vadd.f32 %v860, %v929
        %v962 = vadd.f32 %v861, %v930
        %v963 = vadd.f32 %v862, %v931
        %v964 = vadd.f32 %v863, %v932
        %v965 = vadd.f32 %v864, %v933
        %v966 = vadd.f32 %v865, %v934
        %v967 = vadd.f32 %v866, %v935
        %v968 = vadd.f32 %v867, %v936
        %v969 = vadd.f32 %v868, %v937
        %v970 = vadd.f32 %v869, %v938
        %v971 = vadd.f32 %v870, %v939
        %v972 = vadd.f32 %v871, %v940
        %v973 = vld [vmem:[#allocation2 + $0x9] sm:$0xff]
        %v974 = vld [vmem:[#allocation2 + $0x11] sm:$0xff]
        %v975 = vld [vmem:[#allocation2 + $0x29] sm:$0xff]
        %v976 = vld [vmem:[#allocation2 + $0x31] sm:$0xff]
        %v977 = vld [vmem:[#allocation2 + $0x49] sm:$0xff]
        %v978 = vld [vmem:[#allocation2 + $0x51] sm:$0xff]
        %v979 = vld [vmem:[#allocation2 + $0x69] sm:$0xff]
        %v980 = vld [vmem:[#allocation2 + $0x71] sm:$0xff]
        %v981 = vld [vmem:[#allocation2 + $0x89] sm:$0xff]
        %v982 = vld [vmem:[#allocation2 + $0x91] sm:$0xff]
        %v983 = vld [vmem:[#allocation2 + $0xa9] sm:$0xff]
        %v984 = vld [vmem:[#allocation2 + $0xb1] sm:$0xff]
        %v985 = vld [vmem:[#allocation2 + $0xc9] sm:$0xff]
        %v986 = vld [vmem:[#allocation2 + $0xd1] sm:$0xff]
        %v987 = vld [vmem:[#allocation2 + $0xe9] sm:$0xff]
        %v988 = vld [vmem:[#allocation2 + $0xf1] sm:$0xff]
        %v989 = vld [vmem:[#allocation2 + $0x109] sm:$0xff]
        %v990 = vld [vmem:[#allocation2 + $0x111] sm:$0xff]
        %v991 = vld [vmem:[#allocation2 + $0x129] sm:$0xff]
        %v992 = vld [vmem:[#allocation2 + $0x131] sm:$0xff]
        %v993 = vld [vmem:[#allocation2 + $0x149] sm:$0xff]
        %v994 = vld [vmem:[#allocation2 + $0x151] sm:$0xff]
        %v995 = vld [vmem:[#allocation2 + $0x169] sm:$0xff]
        %v996 = vld [vmem:[#allocation2 + $0x171] sm:$0xff]
        %v997 = vld [vmem:[#allocation2 + $0x189] sm:$0xff]
        %v998 = vld [vmem:[#allocation2 + $0x191] sm:$0xff]
        %v999 = vld [vmem:[#allocation2 + $0x1a9] sm:$0xff]
        %v1000 = vld [vmem:[#allocation2 + $0x1b1] sm:$0xff]
        %v1001 = vld [vmem:[#allocation2 + $0x1c9] sm:$0xff]
        %v1002 = vld [vmem:[#allocation2 + $0x1d1] sm:$0xff]
        %v1003 = vld [vmem:[#allocation2 + $0x1e9] sm:$0xff]
        %v1004 = vld [vmem:[#allocation2 + $0x1f1] sm:$0xff]
        %v1005 = vld [vmem:[%s3 + $0x2] sm:$0x1]
        %v1006 = vlaneseq
        %v1007 = vshrl.u32 %v1006, 7
        %v1008 = vsub.s32 0, %v1007
        %v1009 = vrot.slane %v1005, %v1008
        %v1010 = vmul.f32 %v973, %v1009
        %v1011 = vmul.f32 %v974, %v1009
        %v1012 = vmul.f32 %v975, %v1009
        %v1013 = vmul.f32 %v976, %v1009
        %v1014 = vmul.f32 %v977, %v1009
        %v1015 = vmul.f32 %v978, %v1009
        %v1016 = vmul.f32 %v979, %v1009
        %v1017 = vmul.f32 %v980, %v1009
        %v1018 = vmul.f32 %v981, %v1009
        %v1019 = vmul.f32 %v982, %v1009
        %v1020 = vmul.f32 %v983, %v1009
        %v1021 = vmul.f32 %v984, %v1009
        %v1022 = vmul.f32 %v985, %v1009
        %v1023 = vmul.f32 %v986, %v1009
        %v1024 = vmul.f32 %v987, %v1009
        %v1025 = vmul.f32 %v988, %v1009
        %v1026 = vmul.f32 %v989, %v1009
        %v1027 = vmul.f32 %v990, %v1009
        %v1028 = vmul.f32 %v991, %v1009
        %v1029 = vmul.f32 %v992, %v1009
        %v1030 = vmul.f32 %v993, %v1009
        %v1031 = vmul.f32 %v994, %v1009
        %v1032 = vmul.f32 %v995, %v1009
        %v1033 = vmul.f32 %v996, %v1009
        %v1034 = vmul.f32 %v997, %v1009
        %v1035 = vmul.f32 %v998, %v1009
        %v1036 = vmul.f32 %v999, %v1009
        %v1037 = vmul.f32 %v1000, %v1009
        %v1038 = vmul.f32 %v1001, %v1009
        %v1039 = vmul.f32 %v1002, %v1009
        %v1040 = vmul.f32 %v1003, %v1009
        %v1041 = vmul.f32 %v1004, %v1009
        %v1042 = vadd.f32 %v941, %v1010
        %v1043 = vadd.f32 %v942, %v1011
        %v1044 = vadd.f32 %v943, %v1012
        %v1045 = vadd.f32 %v944, %v1013
        %v1046 = vadd.f32 %v945, %v1014
        %v1047 = vadd.f32 %v946, %v1015
        %v1048 = vadd.f32 %v947, %v1016
        %v1049 = vadd.f32 %v948, %v1017
        %v1050 = vadd.f32 %v949, %v1018
        %v1051 = vadd.f32 %v950, %v1019
        %v1052 = vadd.f32 %v951, %v1020
        %v1053 = vadd.f32 %v952, %v1021
        %v1054 = vadd.f32 %v953, %v1022
        %v1055 = vadd.f32 %v954, %v1023
        %v1056 = vadd.f32 %v955, %v1024
        %v1057 = vadd.f32 %v956, %v1025
        %v1058 = vadd.f32 %v957, %v1026
        %v1059 = vadd.f32 %v958, %v1027
        %v1060 = vadd.f32 %v959, %v1028
        %v1061 = vadd.f32 %v960, %v1029
        %v1062 = vadd.f32 %v961, %v1030
        %v1063 = vadd.f32 %v962, %v1031
        %v1064 = vadd.f32 %v963, %v1032
        %v1065 = vadd.f32 %v964, %v1033
        %v1066 = vadd.f32 %v965, %v1034
        %v1067 = vadd.f32 %v966, %v1035
        %v1068 = vadd.f32 %v967, %v1036
        %v1069 = vadd.f32 %v968, %v1037
        %v1070 = vadd.f32 %v969, %v1038
        %v1071 = vadd.f32 %v970, %v1039
        %v1072 = vadd.f32 %v971, %v1040
        %v1073 = vadd.f32 %v972, %v1041
        %v1074 = vld [vmem:[%s738 + $0x7] sm:$0xff]
        %v1075 = vld [vmem:[%s738 + $0xf] sm:$0xff]
        %v1076 = vld [vmem:[%s738 + $0x27] sm:$0xff]
        %v1077 = vld [vmem:[%s738 + $0x2f] sm:$0xff]
        %v1078 = vld [vmem:[%s738 + $0x47] sm:$0xff]
        %v1079 = vld [vmem:[%s738 + $0x4f] sm:$0xff]
        %v1080 = vld [vmem:[%s738 + $0x67] sm:$0xff]
        %v1081 = vld [vmem:[%s738 + $0x6f] sm:$0xff]
        %v1082 = vld [vmem:[%s738 + $0x87] sm:$0xff]
        %v1083 = vld [vmem:[%s738 + $0x8f] sm:$0xff]
        %v1084 = vld [vmem:[%s738 + $0xa7] sm:$0xff]
        %v1085 = vld [vmem:[%s738 + $0xaf] sm:$0xff]
        %v1086 = vld [vmem:[%s738 + $0xc7] sm:$0xff]
        %v1087 = vld [vmem:[%s738 + $0xcf] sm:$0xff]
        %v1088 = vld [vmem:[%s738 + $0xe7] sm:$0xff]
        %v1089 = vld [vmem:[%s738 + $0xef] sm:$0xff]
        %v1090 = vld [vmem:[%s738 + $0x107] sm:$0xff]
        %v1091 = vld [vmem:[%s738 + $0x10f] sm:$0xff]
        %v1092 = vld [vmem:[%s738 + $0x127] sm:$0xff]
        %v1093 = vld [vmem:[%s738 + $0x12f] sm:$0xff]
        %v1094 = vld [vmem:[%s738 + $0x147] sm:$0xff]
        %v1095 = vld [vmem:[%s738 + $0x14f] sm:$0xff]
        %v1096 = vld [vmem:[%s738 + $0x167] sm:$0xff]
        %v1097 = vld [vmem:[%s738 + $0x16f] sm:$0xff]
        %v1098 = vld [vmem:[%s738 + $0x187] sm:$0xff]
        %v1099 = vld [vmem:[%s738 + $0x18f] sm:$0xff]
        %v1100 = vld [vmem:[%s738 + $0x1a7] sm:$0xff]
        %v1101 = vld [vmem:[%s738 + $0x1af] sm:$0xff]
        %v1102 = vld [vmem:[%s738 + $0x1c7] sm:$0xff]
        %v1103 = vld [vmem:[%s738 + $0x1cf] sm:$0xff]
        %v1104 = vld [vmem:[%s738 + $0x1e7] sm:$0xff]
        %v1105 = vld [vmem:[%s738 + $0x1ef] sm:$0xff]
        %v1106 = vld [vmem:[%s3 + $0x3] sm:$0x1]
        %v1107 = vlaneseq
        %v1108 = vshrl.u32 %v1107, 7
        %v1109 = vsub.s32 0, %v1108
        %v1110 = vrot.slane %v1106, %v1109
        %v1111 = vmul.f32 %v1074, %v1110
        %v1112 = vmul.f32 %v1075, %v1110
        %v1113 = vmul.f32 %v1076, %v1110
        %v1114 = vmul.f32 %v1077, %v1110
        %v1115 = vmul.f32 %v1078, %v1110
        %v1116 = vmul.f32 %v1079, %v1110
        %v1117 = vmul.f32 %v1080, %v1110
        %v1118 = vmul.f32 %v1081, %v1110
        %v1119 = vmul.f32 %v1082, %v1110
        %v1120 = vmul.f32 %v1083, %v1110
        %v1121 = vmul.f32 %v1084, %v1110
        %v1122 = vmul.f32 %v1085, %v1110
        %v1123 = vmul.f32 %v1086, %v1110
        %v1124 = vmul.f32 %v1087, %v1110
        %v1125 = vmul.f32 %v1088, %v1110
        %v1126 = vmul.f32 %v1089, %v1110
        %v1127 = vmul.f32 %v1090, %v1110
        %v1128 = vmul.f32 %v1091, %v1110
        %v1129 = vmul.f32 %v1092, %v1110
        %v1130 = vmul.f32 %v1093, %v1110
        %v1131 = vmul.f32 %v1094, %v1110
        %v1132 = vmul.f32 %v1095, %v1110
        %v1133 = vmul.f32 %v1096, %v1110
        %v1134 = vmul.f32 %v1097, %v1110
        %v1135 = vmul.f32 %v1098, %v1110
        %v1136 = vmul.f32 %v1099, %v1110
        %v1137 = vmul.f32 %v1100, %v1110
        %v1138 = vmul.f32 %v1101, %v1110
        %v1139 = vmul.f32 %v1102, %v1110
        %v1140 = vmul.f32 %v1103, %v1110
        %v1141 = vmul.f32 %v1104, %v1110
        %v1142 = vmul.f32 %v1105, %v1110
        %v1143 = vadd.f32 %v1042, %v1111
        %v1144 = vadd.f32 %v1043, %v1112
        %v1145 = vadd.f32 %v1044, %v1113
        %v1146 = vadd.f32 %v1045, %v1114
        %v1147 = vadd.f32 %v1046, %v1115
        %v1148 = vadd.f32 %v1047, %v1116
        %v1149 = vadd.f32 %v1048, %v1117
        %v1150 = vadd.f32 %v1049, %v1118
        %v1151 = vadd.f32 %v1050, %v1119
        %v1152 = vadd.f32 %v1051, %v1120
        %v1153 = vadd.f32 %v1052, %v1121
        %v1154 = vadd.f32 %v1053, %v1122
        %v1155 = vadd.f32 %v1054, %v1123
        %v1156 = vadd.f32 %v1055, %v1124
        %v1157 = vadd.f32 %v1056, %v1125
        %v1158 = vadd.f32 %v1057, %v1126
        %v1159 = vadd.f32 %v1058, %v1127
        %v1160 = vadd.f32 %v1059, %v1128
        %v1161 = vadd.f32 %v1060, %v1129
        %v1162 = vadd.f32 %v1061, %v1130
        %v1163 = vadd.f32 %v1062, %v1131
        %v1164 = vadd.f32 %v1063, %v1132
        %v1165 = vadd.f32 %v1064, %v1133
        %v1166 = vadd.f32 %v1065, %v1134
        %v1167 = vadd.f32 %v1066, %v1135
        %v1168 = vadd.f32 %v1067, %v1136
        %v1169 = vadd.f32 %v1068, %v1137
        %v1170 = vadd.f32 %v1069, %v1138
        %v1171 = vadd.f32 %v1070, %v1139
        %v1172 = vadd.f32 %v1071, %v1140
        %v1173 = vadd.f32 %v1072, %v1141
        %v1174 = vadd.f32 %v1073, %v1142
        %v1175 = vld [vmem:[%s738 + $0x8] sm:$0xff]
        %v1176 = vld [vmem:[%s738 + $0x10] sm:$0xff]
        %v1177 = vld [vmem:[%s738 + $0x28] sm:$0xff]
        %v1178 = vld [vmem:[%s738 + $0x30] sm:$0xff]
        %v1179 = vld [vmem:[%s738 + $0x48] sm:$0xff]
        %v1180 = vld [vmem:[%s738 + $0x50] sm:$0xff]
        %v1181 = vld [vmem:[%s738 + $0x68] sm:$0xff]
        %v1182 = vld [vmem:[%s738 + $0x70] sm:$0xff]
        %v1183 = vld [vmem:[%s738 + $0x88] sm:$0xff]
        %v1184 = vld [vmem:[%s738 + $0x90] sm:$0xff]
        %v1185 = vld [vmem:[%s738 + $0xa8] sm:$0xff]
        %v1186 = vld [vmem:[%s738 + $0xb0] sm:$0xff]
        %v1187 = vld [vmem:[%s738 + $0xc8] sm:$0xff]
        %v1188 = vld [vmem:[%s738 + $0xd0] sm:$0xff]
        %v1189 = vld [vmem:[%s738 + $0xe8] sm:$0xff]
        %v1190 = vld [vmem:[%s738 + $0xf0] sm:$0xff]
        %v1191 = vld [vmem:[%s738 + $0x108] sm:$0xff]
        %v1192 = vld [vmem:[%s738 + $0x110] sm:$0xff]
        %v1193 = vld [vmem:[%s738 + $0x128] sm:$0xff]
        %v1194 = vld [vmem:[%s738 + $0x130] sm:$0xff]
        %v1195 = vld [vmem:[%s738 + $0x148] sm:$0xff]
        %v1196 = vld [vmem:[%s738 + $0x150] sm:$0xff]
        %v1197 = vld [vmem:[%s738 + $0x168] sm:$0xff]
        %v1198 = vld [vmem:[%s738 + $0x170] sm:$0xff]
        %v1199 = vld [vmem:[%s738 + $0x188] sm:$0xff]
        %v1200 = vld [vmem:[%s738 + $0x190] sm:$0xff]
        %v1201 = vld [vmem:[%s738 + $0x1a8] sm:$0xff]
        %v1202 = vld [vmem:[%s738 + $0x1b0] sm:$0xff]
        %v1203 = vld [vmem:[%s738 + $0x1c8] sm:$0xff]
        %v1204 = vld [vmem:[%s738 + $0x1d0] sm:$0xff]
        %v1205 = vld [vmem:[%s738 + $0x1e8] sm:$0xff]
        %v1206 = vld [vmem:[%s738 + $0x1f0] sm:$0xff]
        %v1207 = vld [vmem:[%s3 + $0x4] sm:$0x1]
        %v1208 = vlaneseq
        %v1209 = vshrl.u32 %v1208, 7
        %v1210 = vsub.s32 0, %v1209
        %v1211 = vrot.slane %v1207, %v1210
        %v1212 = vmul.f32 %v1175, %v1211
        %v1213 = vmul.f32 %v1176, %v1211
        %v1214 = vmul.f32 %v1177, %v1211
        %v1215 = vmul.f32 %v1178, %v1211
        %v1216 = vmul.f32 %v1179, %v1211
        %v1217 = vmul.f32 %v1180, %v1211
        %v1218 = vmul.f32 %v1181, %v1211
        %v1219 = vmul.f32 %v1182, %v1211
        %v1220 = vmul.f32 %v1183, %v1211
        %v1221 = vmul.f32 %v1184, %v1211
        %v1222 = vmul.f32 %v1185, %v1211
        %v1223 = vmul.f32 %v1186, %v1211
        %v1224 = vmul.f32 %v1187, %v1211
        %v1225 = vmul.f32 %v1188, %v1211
        %v1226 = vmul.f32 %v1189, %v1211
        %v1227 = vmul.f32 %v1190, %v1211
        %v1228 = vmul.f32 %v1191, %v1211
        %v1229 = vmul.f32 %v1192, %v1211
        %v1230 = vmul.f32 %v1193, %v1211
        %v1231 = vmul.f32 %v1194, %v1211
        %v1232 = vmul.f32 %v1195, %v1211
        %v1233 = vmul.f32 %v1196, %v1211
        %v1234 = vmul.f32 %v1197, %v1211
        %v1235 = vmul.f32 %v1198, %v1211
        %v1236 = vmul.f32 %v1199, %v1211
        %v1237 = vmul.f32 %v1200, %v1211
        %v1238 = vmul.f32 %v1201, %v1211
        %v1239 = vmul.f32 %v1202, %v1211
        %v1240 = vmul.f32 %v1203, %v1211
        %v1241 = vmul.f32 %v1204, %v1211
        %v1242 = vmul.f32 %v1205, %v1211
        %v1243 = vmul.f32 %v1206, %v1211
        %v1244 = vadd.f32 %v1143, %v1212
        %v1245 = vadd.f32 %v1144, %v1213
        %v1246 = vadd.f32 %v1145, %v1214
        %v1247 = vadd.f32 %v1146, %v1215
        %v1248 = vadd.f32 %v1147, %v1216
        %v1249 = vadd.f32 %v1148, %v1217
        %v1250 = vadd.f32 %v1149, %v1218
        %v1251 = vadd.f32 %v1150, %v1219
        %v1252 = vadd.f32 %v1151, %v1220
        %v1253 = vadd.f32 %v1152, %v1221
        %v1254 = vadd.f32 %v1153, %v1222
        %v1255 = vadd.f32 %v1154, %v1223
        %v1256 = vadd.f32 %v1155, %v1224
        %v1257 = vadd.f32 %v1156, %v1225
        %v1258 = vadd.f32 %v1157, %v1226
        %v1259 = vadd.f32 %v1158, %v1227
        %v1260 = vadd.f32 %v1159, %v1228
        %v1261 = vadd.f32 %v1160, %v1229
        %v1262 = vadd.f32 %v1161, %v1230
        %v1263 = vadd.f32 %v1162, %v1231
        %v1264 = vadd.f32 %v1163, %v1232
        %v1265 = vadd.f32 %v1164, %v1233
        %v1266 = vadd.f32 %v1165, %v1234
        %v1267 = vadd.f32 %v1166, %v1235
        %v1268 = vadd.f32 %v1167, %v1236
        %v1269 = vadd.f32 %v1168, %v1237
        %v1270 = vadd.f32 %v1169, %v1238
        %v1271 = vadd.f32 %v1170, %v1239
        %v1272 = vadd.f32 %v1171, %v1240
        %v1273 = vadd.f32 %v1172, %v1241
        %v1274 = vadd.f32 %v1173, %v1242
        %v1275 = vadd.f32 %v1174, %v1243
        %v1276 = vld [vmem:[%s738 + $0x9] sm:$0xff]
        %v1277 = vld [vmem:[%s738 + $0x11] sm:$0xff]
        %v1278 = vld [vmem:[%s738 + $0x29] sm:$0xff]
        %v1279 = vld [vmem:[%s738 + $0x31] sm:$0xff]
        %v1280 = vld [vmem:[%s738 + $0x49] sm:$0xff]
        %v1281 = vld [vmem:[%s738 + $0x51] sm:$0xff]
        %v1282 = vld [vmem:[%s738 + $0x69] sm:$0xff]
        %v1283 = vld [vmem:[%s738 + $0x71] sm:$0xff]
        %v1284 = vld [vmem:[%s738 + $0x89] sm:$0xff]
        %v1285 = vld [vmem:[%s738 + $0x91] sm:$0xff]
        %v1286 = vld [vmem:[%s738 + $0xa9] sm:$0xff]
        %v1287 = vld [vmem:[%s738 + $0xb1] sm:$0xff]
        %v1288 = vld [vmem:[%s738 + $0xc9] sm:$0xff]
        %v1289 = vld [vmem:[%s738 + $0xd1] sm:$0xff]
        %v1290 = vld [vmem:[%s738 + $0xe9] sm:$0xff]
        %v1291 = vld [vmem:[%s738 + $0xf1] sm:$0xff]
        %v1292 = vld [vmem:[%s738 + $0x109] sm:$0xff]
        %v1293 = vld [vmem:[%s738 + $0x111] sm:$0xff]
        %v1294 = vld [vmem:[%s738 + $0x129] sm:$0xff]
        %v1295 = vld [vmem:[%s738 + $0x131] sm:$0xff]
        %v1296 = vld [vmem:[%s738 + $0x149] sm:$0xff]
        %v1297 = vld [vmem:[%s738 + $0x151] sm:$0xff]
        %v1298 = vld [vmem:[%s738 + $0x169] sm:$0xff]
        %v1299 = vld [vmem:[%s738 + $0x171] sm:$0xff]
        %v1300 = vld [vmem:[%s738 + $0x189] sm:$0xff]
        %v1301 = vld [vmem:[%s738 + $0x191] sm:$0xff]
        %v1302 = vld [vmem:[%s738 + $0x1a9] sm:$0xff]
        %v1303 = vld [vmem:[%s738 + $0x1b1] sm:$0xff]
        %v1304 = vld [vmem:[%s738 + $0x1c9] sm:$0xff]
        %v1305 = vld [vmem:[%s738 + $0x1d1] sm:$0xff]
        %v1306 = vld [vmem:[%s738 + $0x1e9] sm:$0xff]
        %v1307 = vld [vmem:[%s738 + $0x1f1] sm:$0xff]
        %v1308 = vld [vmem:[%s3 + $0x5] sm:$0x1]
        %v1309 = vlaneseq
        %v1310 = vshrl.u32 %v1309, 7
        %v1311 = vsub.s32 0, %v1310
        %v1312 = vrot.slane %v1308, %v1311
        %v1313 = vmul.f32 %v1276, %v1312
        %v1314 = vmul.f32 %v1277, %v1312
        %v1315 = vmul.f32 %v1278, %v1312
        %v1316 = vmul.f32 %v1279, %v1312
        %v1317 = vmul.f32 %v1280, %v1312
        %v1318 = vmul.f32 %v1281, %v1312
        %v1319 = vmul.f32 %v1282, %v1312
        %v1320 = vmul.f32 %v1283, %v1312
        %v1321 = vmul.f32 %v1284, %v1312
        %v1322 = vmul.f32 %v1285, %v1312
        %v1323 = vmul.f32 %v1286, %v1312
        %v1324 = vmul.f32 %v1287, %v1312
        %v1325 = vmul.f32 %v1288, %v1312
        %v1326 = vmul.f32 %v1289, %v1312
        %v1327 = vmul.f32 %v1290, %v1312
        %v1328 = vmul.f32 %v1291, %v1312
        %v1329 = vmul.f32 %v1292, %v1312
        %v1330 = vmul.f32 %v1293, %v1312
        %v1331 = vmul.f32 %v1294, %v1312
        %v1332 = vmul.f32 %v1295, %v1312
        %v1333 = vmul.f32 %v1296, %v1312
        %v1334 = vmul.f32 %v1297, %v1312
        %v1335 = vmul.f32 %v1298, %v1312
        %v1336 = vmul.f32 %v1299, %v1312
        %v1337 = vmul.f32 %v1300, %v1312
        %v1338 = vmul.f32 %v1301, %v1312
        %v1339 = vmul.f32 %v1302, %v1312
        %v1340 = vmul.f32 %v1303, %v1312
        %v1341 = vmul.f32 %v1304, %v1312
        %v1342 = vmul.f32 %v1305, %v1312
        %v1343 = vmul.f32 %v1306, %v1312
        %v1344 = vmul.f32 %v1307, %v1312
        %v1345 = vadd.f32 %v1244, %v1313
        %v1346 = vadd.f32 %v1245, %v1314
        %v1347 = vadd.f32 %v1246, %v1315
        %v1348 = vadd.f32 %v1247, %v1316
        %v1349 = vadd.f32 %v1248, %v1317
        %v1350 = vadd.f32 %v1249, %v1318
        %v1351 = vadd.f32 %v1250, %v1319
        %v1352 = vadd.f32 %v1251, %v1320
        %v1353 = vadd.f32 %v1252, %v1321
        %v1354 = vadd.f32 %v1253, %v1322
        %v1355 = vadd.f32 %v1254, %v1323
        %v1356 = vadd.f32 %v1255, %v1324
        %v1357 = vadd.f32 %v1256, %v1325
        %v1358 = vadd.f32 %v1257, %v1326
        %v1359 = vadd.f32 %v1258, %v1327
        %v1360 = vadd.f32 %v1259, %v1328
        %v1361 = vadd.f32 %v1260, %v1329
        %v1362 = vadd.f32 %v1261, %v1330
        %v1363 = vadd.f32 %v1262, %v1331
        %v1364 = vadd.f32 %v1263, %v1332
        %v1365 = vadd.f32 %v1264, %v1333
        %v1366 = vadd.f32 %v1265, %v1334
        %v1367 = vadd.f32 %v1266, %v1335
        %v1368 = vadd.f32 %v1267, %v1336
        %v1369 = vadd.f32 %v1268, %v1337
        %v1370 = vadd.f32 %v1269, %v1338
        %v1371 = vadd.f32 %v1270, %v1339
        %v1372 = vadd.f32 %v1271, %v1340
        %v1373 = vadd.f32 %v1272, %v1341
        %v1374 = vadd.f32 %v1273, %v1342
        %v1375 = vadd.f32 %v1274, %v1343
        %v1376 = vadd.f32 %v1275, %v1344
        %s1377 = scalar_lea.vmem [#allocation2], 64
        %v1378 = vld [vmem:[%s1377 + $0x7] sm:$0xff]
        %v1379 = vld [vmem:[%s1377 + $0xf] sm:$0xff]
        %v1380 = vld [vmem:[%s1377 + $0x27] sm:$0xff]
        %v1381 = vld [vmem:[%s1377 + $0x2f] sm:$0xff]
        %v1382 = vld [vmem:[%s1377 + $0x47] sm:$0xff]
        %v1383 = vld [vmem:[%s1377 + $0x4f] sm:$0xff]
        %v1384 = vld [vmem:[%s1377 + $0x67] sm:$0xff]
        %v1385 = vld [vmem:[%s1377 + $0x6f] sm:$0xff]
        %v1386 = vld [vmem:[%s1377 + $0x87] sm:$0xff]
        %v1387 = vld [vmem:[%s1377 + $0x8f] sm:$0xff]
        %v1388 = vld [vmem:[%s1377 + $0xa7] sm:$0xff]
        %v1389 = vld [vmem:[%s1377 + $0xaf] sm:$0xff]
        %v1390 = vld [vmem:[%s1377 + $0xc7] sm:$0xff]
        %v1391 = vld [vmem:[%s1377 + $0xcf] sm:$0xff]
        %v1392 = vld [vmem:[%s1377 + $0xe7] sm:$0xff]
        %v1393 = vld [vmem:[%s1377 + $0xef] sm:$0xff]
        %v1394 = vld [vmem:[%s1377 + $0x107] sm:$0xff]
        %v1395 = vld [vmem:[%s1377 + $0x10f] sm:$0xff]
        %v1396 = vld [vmem:[%s1377 + $0x127] sm:$0xff]
        %v1397 = vld [vmem:[%s1377 + $0x12f] sm:$0xff]
        %v1398 = vld [vmem:[%s1377 + $0x147] sm:$0xff]
        %v1399 = vld [vmem:[%s1377 + $0x14f] sm:$0xff]
        %v1400 = vld [vmem:[%s1377 + $0x167] sm:$0xff]
        %v1401 = vld [vmem:[%s1377 + $0x16f] sm:$0xff]
        %v1402 = vld [vmem:[%s1377 + $0x187] sm:$0xff]
        %v1403 = vld [vmem:[%s1377 + $0x18f] sm:$0xff]
        %v1404 = vld [vmem:[%s1377 + $0x1a7] sm:$0xff]
        %v1405 = vld [vmem:[%s1377 + $0x1af] sm:$0xff]
        %v1406 = vld [vmem:[%s1377 + $0x1c7] sm:$0xff]
        %v1407 = vld [vmem:[%s1377 + $0x1cf] sm:$0xff]
        %v1408 = vld [vmem:[%s1377 + $0x1e7] sm:$0xff]
        %v1409 = vld [vmem:[%s1377 + $0x1ef] sm:$0xff]
        %v1410 = vld [vmem:[%s3 + $0x6] sm:$0x1]
        %v1411 = vlaneseq
        %v1412 = vshrl.u32 %v1411, 7
        %v1413 = vsub.s32 0, %v1412
        %v1414 = vrot.slane %v1410, %v1413
        %v1415 = vmul.f32 %v1378, %v1414
        %v1416 = vmul.f32 %v1379, %v1414
        %v1417 = vmul.f32 %v1380, %v1414
        %v1418 = vmul.f32 %v1381, %v1414
        %v1419 = vmul.f32 %v1382, %v1414
        %v1420 = vmul.f32 %v1383, %v1414
        %v1421 = vmul.f32 %v1384, %v1414
        %v1422 = vmul.f32 %v1385, %v1414
        %v1423 = vmul.f32 %v1386, %v1414
        %v1424 = vmul.f32 %v1387, %v1414
        %v1425 = vmul.f32 %v1388, %v1414
        %v1426 = vmul.f32 %v1389, %v1414
        %v1427 = vmul.f32 %v1390, %v1414
        %v1428 = vmul.f32 %v1391, %v1414
        %v1429 = vmul.f32 %v1392, %v1414
        %v1430 = vmul.f32 %v1393, %v1414
        %v1431 = vmul.f32 %v1394, %v1414
        %v1432 = vmul.f32 %v1395, %v1414
        %v1433 = vmul.f32 %v1396, %v1414
        %v1434 = vmul.f32 %v1397, %v1414
        %v1435 = vmul.f32 %v1398, %v1414
        %v1436 = vmul.f32 %v1399, %v1414
        %v1437 = vmul.f32 %v1400, %v1414
        %v1438 = vmul.f32 %v1401, %v1414
        %v1439 = vmul.f32 %v1402, %v1414
        %v1440 = vmul.f32 %v1403, %v1414
        %v1441 = vmul.f32 %v1404, %v1414
        %v1442 = vmul.f32 %v1405, %v1414
        %v1443 = vmul.f32 %v1406, %v1414
        %v1444 = vmul.f32 %v1407, %v1414
        %v1445 = vmul.f32 %v1408, %v1414
        %v1446 = vmul.f32 %v1409, %v1414
        %v1447 = vadd.f32 %v1345, %v1415
        %v1448 = vadd.f32 %v1346, %v1416
        %v1449 = vadd.f32 %v1347, %v1417
        %v1450 = vadd.f32 %v1348, %v1418
        %v1451 = vadd.f32 %v1349, %v1419
        %v1452 = vadd.f32 %v1350, %v1420
        %v1453 = vadd.f32 %v1351, %v1421
        %v1454 = vadd.f32 %v1352, %v1422
        %v1455 = vadd.f32 %v1353, %v1423
        %v1456 = vadd.f32 %v1354, %v1424
        %v1457 = vadd.f32 %v1355, %v1425
        %v1458 = vadd.f32 %v1356, %v1426
        %v1459 = vadd.f32 %v1357, %v1427
        %v1460 = vadd.f32 %v1358, %v1428
        %v1461 = vadd.f32 %v1359, %v1429
        %v1462 = vadd.f32 %v1360, %v1430
        %v1463 = vadd.f32 %v1361, %v1431
        %v1464 = vadd.f32 %v1362, %v1432
        %v1465 = vadd.f32 %v1363, %v1433
        %v1466 = vadd.f32 %v1364, %v1434
        %v1467 = vadd.f32 %v1365, %v1435
        %v1468 = vadd.f32 %v1366, %v1436
        %v1469 = vadd.f32 %v1367, %v1437
        %v1470 = vadd.f32 %v1368, %v1438
        %v1471 = vadd.f32 %v1369, %v1439
        %v1472 = vadd.f32 %v1370, %v1440
        %v1473 = vadd.f32 %v1371, %v1441
        %v1474 = vadd.f32 %v1372, %v1442
        %v1475 = vadd.f32 %v1373, %v1443
        %v1476 = vadd.f32 %v1374, %v1444
        %v1477 = vadd.f32 %v1375, %v1445
        %v1478 = vadd.f32 %v1376, %v1446
        %v1479 = vld [vmem:[%s1377 + $0x8] sm:$0xff]
        %v1480 = vld [vmem:[%s1377 + $0x10] sm:$0xff]
        %v1481 = vld [vmem:[%s1377 + $0x28] sm:$0xff]
        %v1482 = vld [vmem:[%s1377 + $0x30] sm:$0xff]
        %v1483 = vld [vmem:[%s1377 + $0x48] sm:$0xff]
        %v1484 = vld [vmem:[%s1377 + $0x50] sm:$0xff]
        %v1485 = vld [vmem:[%s1377 + $0x68] sm:$0xff]
        %v1486 = vld [vmem:[%s1377 + $0x70] sm:$0xff]
        %v1487 = vld [vmem:[%s1377 + $0x88] sm:$0xff]
        %v1488 = vld [vmem:[%s1377 + $0x90] sm:$0xff]
        %v1489 = vld [vmem:[%s1377 + $0xa8] sm:$0xff]
        %v1490 = vld [vmem:[%s1377 + $0xb0] sm:$0xff]
        %v1491 = vld [vmem:[%s1377 + $0xc8] sm:$0xff]
        %v1492 = vld [vmem:[%s1377 + $0xd0] sm:$0xff]
        %v1493 = vld [vmem:[%s1377 + $0xe8] sm:$0xff]
        %v1494 = vld [vmem:[%s1377 + $0xf0] sm:$0xff]
        %v1495 = vld [vmem:[%s1377 + $0x108] sm:$0xff]
        %v1496 = vld [vmem:[%s1377 + $0x110] sm:$0xff]
        %v1497 = vld [vmem:[%s1377 + $0x128] sm:$0xff]
        %v1498 = vld [vmem:[%s1377 + $0x130] sm:$0xff]
        %v1499 = vld [vmem:[%s1377 + $0x148] sm:$0xff]
        %v1500 = vld [vmem:[%s1377 + $0x150] sm:$0xff]
        %v1501 = vld [vmem:[%s1377 + $0x168] sm:$0xff]
        %v1502 = vld [vmem:[%s1377 + $0x170] sm:$0xff]
        %v1503 = vld [vmem:[%s1377 + $0x188] sm:$0xff]
        %v1504 = vld [vmem:[%s1377 + $0x190] sm:$0xff]
        %v1505 = vld [vmem:[%s1377 + $0x1a8] sm:$0xff]
        %v1506 = vld [vmem:[%s1377 + $0x1b0] sm:$0xff]
        %v1507 = vld [vmem:[%s1377 + $0x1c8] sm:$0xff]
        %v1508 = vld [vmem:[%s1377 + $0x1d0] sm:$0xff]
        %v1509 = vld [vmem:[%s1377 + $0x1e8] sm:$0xff]
        %v1510 = vld [vmem:[%s1377 + $0x1f0] sm:$0xff]
        %v1511 = vld [vmem:[%s3 + $0x7] sm:$0x1]
        %v1512 = vlaneseq
        %v1513 = vshrl.u32 %v1512, 7
        %v1514 = vsub.s32 0, %v1513
        %v1515 = vrot.slane %v1511, %v1514
        %v1516 = vmul.f32 %v1479, %v1515
        %v1517 = vmul.f32 %v1480, %v1515
        %v1518 = vmul.f32 %v1481, %v1515
        %v1519 = vmul.f32 %v1482, %v1515
        %v1520 = vmul.f32 %v1483, %v1515
        %v1521 = vmul.f32 %v1484, %v1515
        %v1522 = vmul.f32 %v1485, %v1515
        %v1523 = vmul.f32 %v1486, %v1515
        %v1524 = vmul.f32 %v1487, %v1515
        %v1525 = vmul.f32 %v1488, %v1515
        %v1526 = vmul.f32 %v1489, %v1515
        %v1527 = vmul.f32 %v1490, %v1515
        %v1528 = vmul.f32 %v1491, %v1515
        %v1529 = vmul.f32 %v1492, %v1515
        %v1530 = vmul.f32 %v1493, %v1515
        %v1531 = vmul.f32 %v1494, %v1515
        %v1532 = vmul.f32 %v1495, %v1515
        %v1533 = vmul.f32 %v1496, %v1515
        %v1534 = vmul.f32 %v1497, %v1515
        %v1535 = vmul.f32 %v1498, %v1515
        %v1536 = vmul.f32 %v1499, %v1515
        %v1537 = vmul.f32 %v1500, %v1515
        %v1538 = vmul.f32 %v1501, %v1515
        %v1539 = vmul.f32 %v1502, %v1515
        %v1540 = vmul.f32 %v1503, %v1515
        %v1541 = vmul.f32 %v1504, %v1515
        %v1542 = vmul.f32 %v1505, %v1515
        %v1543 = vmul.f32 %v1506, %v1515
        %v1544 = vmul.f32 %v1507, %v1515
        %v1545 = vmul.f32 %v1508, %v1515
        %v1546 = vmul.f32 %v1509, %v1515
        %v1547 = vmul.f32 %v1510, %v1515
        %v1548 = vadd.f32 %v1447, %v1516
        %v1549 = vadd.f32 %v1448, %v1517
        %v1550 = vadd.f32 %v1449, %v1518
        %v1551 = vadd.f32 %v1450, %v1519
        %v1552 = vadd.f32 %v1451, %v1520
        %v1553 = vadd.f32 %v1452, %v1521
        %v1554 = vadd.f32 %v1453, %v1522
        %v1555 = vadd.f32 %v1454, %v1523
        %v1556 = vadd.f32 %v1455, %v1524
        %v1557 = vadd.f32 %v1456, %v1525
        %v1558 = vadd.f32 %v1457, %v1526
        %v1559 = vadd.f32 %v1458, %v1527
        %v1560 = vadd.f32 %v1459, %v1528
        %v1561 = vadd.f32 %v1460, %v1529
        %v1562 = vadd.f32 %v1461, %v1530
        %v1563 = vadd.f32 %v1462, %v1531
        %v1564 = vadd.f32 %v1463, %v1532
        %v1565 = vadd.f32 %v1464, %v1533
        %v1566 = vadd.f32 %v1465, %v1534
        %v1567 = vadd.f32 %v1466, %v1535
        %v1568 = vadd.f32 %v1467, %v1536
        %v1569 = vadd.f32 %v1468, %v1537
        %v1570 = vadd.f32 %v1469, %v1538
        %v1571 = vadd.f32 %v1470, %v1539
        %v1572 = vadd.f32 %v1471, %v1540
        %v1573 = vadd.f32 %v1472, %v1541
        %v1574 = vadd.f32 %v1473, %v1542
        %v1575 = vadd.f32 %v1474, %v1543
        %v1576 = vadd.f32 %v1475, %v1544
        %v1577 = vadd.f32 %v1476, %v1545
        %v1578 = vadd.f32 %v1477, %v1546
        %v1579 = vadd.f32 %v1478, %v1547
        %v1580 = vld [vmem:[%s1377 + $0x9] sm:$0xff]
        %v1581 = vld [vmem:[%s1377 + $0x11] sm:$0xff]
        %v1582 = vld [vmem:[%s1377 + $0x29] sm:$0xff]
        %v1583 = vld [vmem:[%s1377 + $0x31] sm:$0xff]
        %v1584 = vld [vmem:[%s1377 + $0x49] sm:$0xff]
        %v1585 = vld [vmem:[%s1377 + $0x51] sm:$0xff]
        %v1586 = vld [vmem:[%s1377 + $0x69] sm:$0xff]
        %v1587 = vld [vmem:[%s1377 + $0x71] sm:$0xff]
        %v1588 = vld [vmem:[%s1377 + $0x89] sm:$0xff]
        %v1589 = vld [vmem:[%s1377 + $0x91] sm:$0xff]
        %v1590 = vld [vmem:[%s1377 + $0xa9] sm:$0xff]
        %v1591 = vld [vmem:[%s1377 + $0xb1] sm:$0xff]
        %v1592 = vld [vmem:[%s1377 + $0xc9] sm:$0xff]
        %v1593 = vld [vmem:[%s1377 + $0xd1] sm:$0xff]
        %v1594 = vld [vmem:[%s1377 + $0xe9] sm:$0xff]
        %v1595 = vld [vmem:[%s1377 + $0xf1] sm:$0xff]
        %v1596 = vld [vmem:[%s1377 + $0x109] sm:$0xff]
        %v1597 = vld [vmem:[%s1377 + $0x111] sm:$0xff]
        %v1598 = vld [vmem:[%s1377 + $0x129] sm:$0xff]
        %v1599 = vld [vmem:[%s1377 + $0x131] sm:$0xff]
        %v1600 = vld [vmem:[%s1377 + $0x149] sm:$0xff]
        %v1601 = vld [vmem:[%s1377 + $0x151] sm:$0xff]
        %v1602 = vld [vmem:[%s1377 + $0x169] sm:$0xff]
        %v1603 = vld [vmem:[%s1377 + $0x171] sm:$0xff]
        %v1604 = vld [vmem:[%s1377 + $0x189] sm:$0xff]
        %v1605 = vld [vmem:[%s1377 + $0x191] sm:$0xff]
        %v1606 = vld [vmem:[%s1377 + $0x1a9] sm:$0xff]
        %v1607 = vld [vmem:[%s1377 + $0x1b1] sm:$0xff]
        %v1608 = vld [vmem:[%s1377 + $0x1c9] sm:$0xff]
        %v1609 = vld [vmem:[%s1377 + $0x1d1] sm:$0xff]
        %v1610 = vld [vmem:[%s1377 + $0x1e9] sm:$0xff]
        %v1611 = vld [vmem:[%s1377 + $0x1f1] sm:$0xff]
        %v1612 = vld [vmem:[%s3 + $0x8] sm:$0x1]
        %v1613 = vlaneseq
        %v1614 = vshrl.u32 %v1613, 7
        %v1615 = vsub.s32 0, %v1614
        %v1616 = vrot.slane %v1612, %v1615
        %v1617 = vmul.f32 %v1580, %v1616
        %v1618 = vmul.f32 %v1581, %v1616
        %v1619 = vmul.f32 %v1582, %v1616
        %v1620 = vmul.f32 %v1583, %v1616
        %v1621 = vmul.f32 %v1584, %v1616
        %v1622 = vmul.f32 %v1585, %v1616
        %v1623 = vmul.f32 %v1586, %v1616
        %v1624 = vmul.f32 %v1587, %v1616
        %v1625 = vmul.f32 %v1588, %v1616
        %v1626 = vmul.f32 %v1589, %v1616
        %v1627 = vmul.f32 %v1590, %v1616
        %v1628 = vmul.f32 %v1591, %v1616
        %v1629 = vmul.f32 %v1592, %v1616
        %v1630 = vmul.f32 %v1593, %v1616
        %v1631 = vmul.f32 %v1594, %v1616
        %v1632 = vmul.f32 %v1595, %v1616
        %v1633 = vmul.f32 %v1596, %v1616
        %v1634 = vmul.f32 %v1597, %v1616
        %v1635 = vmul.f32 %v1598, %v1616
        %v1636 = vmul.f32 %v1599, %v1616
        %v1637 = vmul.f32 %v1600, %v1616
        %v1638 = vmul.f32 %v1601, %v1616
        %v1639 = vmul.f32 %v1602, %v1616
        %v1640 = vmul.f32 %v1603, %v1616
        %v1641 = vmul.f32 %v1604, %v1616
        %v1642 = vmul.f32 %v1605, %v1616
        %v1643 = vmul.f32 %v1606, %v1616
        %v1644 = vmul.f32 %v1607, %v1616
        %v1645 = vmul.f32 %v1608, %v1616
        %v1646 = vmul.f32 %v1609, %v1616
        %v1647 = vmul.f32 %v1610, %v1616
        %v1648 = vmul.f32 %v1611, %v1616
        %v1649 = vadd.f32 %v1548, %v1617
        %v1650 = vadd.f32 %v1549, %v1618
        %v1651 = vadd.f32 %v1550, %v1619
        %v1652 = vadd.f32 %v1551, %v1620
        %v1653 = vadd.f32 %v1552, %v1621
        %v1654 = vadd.f32 %v1553, %v1622
        %v1655 = vadd.f32 %v1554, %v1623
        %v1656 = vadd.f32 %v1555, %v1624
        %v1657 = vadd.f32 %v1556, %v1625
        %v1658 = vadd.f32 %v1557, %v1626
        %v1659 = vadd.f32 %v1558, %v1627
        %v1660 = vadd.f32 %v1559, %v1628
        %v1661 = vadd.f32 %v1560, %v1629
        %v1662 = vadd.f32 %v1561, %v1630
        %v1663 = vadd.f32 %v1562, %v1631
        %v1664 = vadd.f32 %v1563, %v1632
        %v1665 = vadd.f32 %v1564, %v1633
        %v1666 = vadd.f32 %v1565, %v1634
        %v1667 = vadd.f32 %v1566, %v1635
        %v1668 = vadd.f32 %v1567, %v1636
        %v1669 = vadd.f32 %v1568, %v1637
        %v1670 = vadd.f32 %v1569, %v1638
        %v1671 = vadd.f32 %v1570, %v1639
        %v1672 = vadd.f32 %v1571, %v1640
        %v1673 = vadd.f32 %v1572, %v1641
        %v1674 = vadd.f32 %v1573, %v1642
        %v1675 = vadd.f32 %v1574, %v1643
        %v1676 = vadd.f32 %v1575, %v1644
        %v1677 = vadd.f32 %v1576, %v1645
        %v1678 = vadd.f32 %v1577, %v1646
        %v1679 = vadd.f32 %v1578, %v1647
        %v1680 = vadd.f32 %v1579, %v1648
        %v1681 = vld [vmem:[%s4] sm:$0x1]
        %v1683 = vlaneseq
        %v1684 = vshrl.u32 %v1683, 7
        %v1685 = vsub.s32 0, %v1684
        %v1686 = vrot.slane %v1681, %v1685
        %v1688 = vadd.f32 %v1649, %v1686
        %v1689 = vadd.f32 %v1650, %v1686
        %v1690 = vadd.f32 %v1651, %v1686
        %v1691 = vadd.f32 %v1652, %v1686
        %v1692 = vadd.f32 %v1653, %v1686
        %v1693 = vadd.f32 %v1654, %v1686
        %v1694 = vadd.f32 %v1655, %v1686
        %v1695 = vadd.f32 %v1656, %v1686
        %v1696 = vadd.f32 %v1657, %v1686
        %v1697 = vadd.f32 %v1658, %v1686
        %v1698 = vadd.f32 %v1659, %v1686
        %v1699 = vadd.f32 %v1660, %v1686
        %v1700 = vadd.f32 %v1661, %v1686
        %v1701 = vadd.f32 %v1662, %v1686
        %v1702 = vadd.f32 %v1663, %v1686
        %v1703 = vadd.f32 %v1664, %v1686
        %v1704 = vadd.f32 %v1665, %v1686
        %v1705 = vadd.f32 %v1666, %v1686
        %v1706 = vadd.f32 %v1667, %v1686
        %v1707 = vadd.f32 %v1668, %v1686
        %v1708 = vadd.f32 %v1669, %v1686
        %v1709 = vadd.f32 %v1670, %v1686
        %v1710 = vadd.f32 %v1671, %v1686
        %v1711 = vadd.f32 %v1672, %v1686
        %v1712 = vadd.f32 %v1673, %v1686
        %v1713 = vadd.f32 %v1674, %v1686
        %v1714 = vadd.f32 %v1675, %v1686
        %v1715 = vadd.f32 %v1676, %v1686
        %v1716 = vadd.f32 %v1677, %v1686
        %v1717 = vadd.f32 %v1678, %v1686
        %v1718 = vadd.f32 %v1679, %v1686
        %v1719 = vadd.f32 %v1680, %v1686
        %v1720 = vmax.f32 %v1688, 0.0
        %v1721 = vmax.f32 %v1689, 0.0
        %v1722 = vmax.f32 %v1690, 0.0
        %v1723 = vmax.f32 %v1691, 0.0
        %v1724 = vmax.f32 %v1692, 0.0
        %v1725 = vmax.f32 %v1693, 0.0
        %v1726 = vmax.f32 %v1694, 0.0
        %v1727 = vmax.f32 %v1695, 0.0
        %v1728 = vmax.f32 %v1696, 0.0
        %v1729 = vmax.f32 %v1697, 0.0
        %v1730 = vmax.f32 %v1698, 0.0
        %v1731 = vmax.f32 %v1699, 0.0
        %v1732 = vmax.f32 %v1700, 0.0
        %v1733 = vmax.f32 %v1701, 0.0
        %v1734 = vmax.f32 %v1702, 0.0
        %v1735 = vmax.f32 %v1703, 0.0
        %v1736 = vmax.f32 %v1704, 0.0
        %v1737 = vmax.f32 %v1705, 0.0
        %v1738 = vmax.f32 %v1706, 0.0
        %v1739 = vmax.f32 %v1707, 0.0
        %v1740 = vmax.f32 %v1708, 0.0
        %v1741 = vmax.f32 %v1709, 0.0
        %v1742 = vmax.f32 %v1710, 0.0
        %v1743 = vmax.f32 %v1711, 0.0
        %v1744 = vmax.f32 %v1712, 0.0
        %v1745 = vmax.f32 %v1713, 0.0
        %v1746 = vmax.f32 %v1714, 0.0
        %v1747 = vmax.f32 %v1715, 0.0
        %v1748 = vmax.f32 %v1716, 0.0
        %v1749 = vmax.f32 %v1717, 0.0
        %v1750 = vmax.f32 %v1718, 0.0
        %v1751 = vmax.f32 %v1719, 0.0
        %v1752 = vpack.c.bf16 %v1721, %v1720
        %v1753 = vpack.c.bf16 %v1723, %v1722
        %v1754 = vpack.c.bf16 %v1725, %v1724
        %v1755 = vpack.c.bf16 %v1727, %v1726
        %v1756 = vpack.c.bf16 %v1729, %v1728
        %v1757 = vpack.c.bf16 %v1731, %v1730
        %v1758 = vpack.c.bf16 %v1733, %v1732
        %v1759 = vpack.c.bf16 %v1735, %v1734
        %v1760 = vpack.c.bf16 %v1737, %v1736
        %v1761 = vpack.c.bf16 %v1739, %v1738
        %v1762 = vpack.c.bf16 %v1741, %v1740
        %v1763 = vpack.c.bf16 %v1743, %v1742
        %v1764 = vpack.c.bf16 %v1745, %v1744
        %v1765 = vpack.c.bf16 %v1747, %v1746
        %v1766 = vpack.c.bf16 %v1749, %v1748
        %v1767 = vpack.c.bf16 %v1751, %v1750
        %v1768 = vld [vmem:[%s5] sm:$0xf]
        %v1769 = vld [vmem:[%s5 + $0x4] sm:$0xf]
        %v1770 = vld [vmem:[%s5 + $0x8] sm:$0xf]
        %v1771 = vld [vmem:[%s5 + $0xc] sm:$0xf]
        %v1772 = vld [vmem:[%s5 + $0x10] sm:$0xf]
        %v1773 = vld [vmem:[%s5 + $0x14] sm:$0xf]
        %v1774 = vld [vmem:[%s5 + $0x18] sm:$0xf]
        %v1775 = vld [vmem:[%s5 + $0x1c] sm:$0xf]
        %v1776 = vld [vmem:[%s5 + $0x20] sm:$0xf]
        %v1777 = vld [vmem:[%s5 + $0x24] sm:$0xf]
        %v1778 = vld [vmem:[%s5 + $0x28] sm:$0xf]
        %v1779 = vld [vmem:[%s5 + $0x2c] sm:$0xf]
        %v1780 = vld [vmem:[%s5 + $0x30] sm:$0xf]
        %v1781 = vld [vmem:[%s5 + $0x34] sm:$0xf]
        %v1782 = vld [vmem:[%s5 + $0x38] sm:$0xf]
        %v1783 = vld [vmem:[%s5 + $0x3c] sm:$0xf]
        %v1784 = vld [vmem:[%s6] sm:$0x1]
        %v1786 = vlaneseq
        %v1787 = vshrl.u32 %v1786, 7
        %v1788 = vsub.s32 0, %v1787
        %v1789 = vrot.slane %v1784, %v1788
        %v1807 = vunpack.c.l.b16 %v1768
        %v1808 = vunpack.c.l.b16 %v1769
        %v1809 = vunpack.c.l.b16 %v1770
        %v1810 = vunpack.c.l.b16 %v1771
        %v1811 = vunpack.c.l.b16 %v1772
        %v1812 = vunpack.c.l.b16 %v1773
        %v1813 = vunpack.c.l.b16 %v1774
        %v1814 = vunpack.c.l.b16 %v1775
        %v1815 = vunpack.c.l.b16 %v1776
        %v1816 = vunpack.c.l.b16 %v1777
        %v1817 = vunpack.c.l.b16 %v1778
        %v1818 = vunpack.c.l.b16 %v1779
        %v1819 = vunpack.c.l.b16 %v1780
        %v1820 = vunpack.c.l.b16 %v1781
        %v1821 = vunpack.c.l.b16 %v1782
        %v1822 = vunpack.c.l.b16 %v1783
        %v1823 = vpack.c.b16 %v1808, %v1807
        %v1824 = vpack.c.b16 %v1810, %v1809
        %v1825 = vpack.c.b16 %v1812, %v1811
        %v1826 = vpack.c.b16 %v1814, %v1813
        %v1827 = vpack.c.b16 %v1816, %v1815
        %v1828 = vpack.c.b16 %v1818, %v1817
        %v1829 = vpack.c.b16 %v1820, %v1819
        %v1830 = vpack.c.b16 %v1822, %v1821
        %1839 = vmatprep.subr.bf16.mxu0 0
        %1840 = vmatpush1.bf16.msra.mxu0 %v1823
        %1841 = vmatprep.subr.bf16.mxu0 0
        %1842 = vmatpush1.bf16.msra.mxu0 %v1824
        %1843 = vmatprep.subr.bf16.mxu0 0
        %1844 = vmatpush1.bf16.msra.mxu0 %v1825
        %1845 = vmatprep.subr.bf16.mxu0 0
        %1846 = vmatpush1.bf16.msra.mxu0 %v1826
        %1847 = vmatprep.subr.bf16.mxu0 0
        %1848 = vmatpush1.bf16.msra.mxu0 %v1827
        %1849 = vmatprep.subr.bf16.mxu0 0
        %1850 = vmatpush1.bf16.msra.mxu0 %v1828
        %1851 = vmatprep.subr.bf16.mxu0 0
        %1852 = vmatpush1.bf16.msra.mxu0 %v1829
        %1853 = vmatprep.subr.bf16.mxu0 0
        %1854 = vmatpush1.bf16.msra.mxu0 %v1830
        %1855 = vmatprep.subr.bf16.mxu0 0
        %1856 = vmatpush1.bf16.msra.mxu0 0
        %1857 = vmatprep.subr.bf16.mxu0 0
        %1858 = vmatpush1.bf16.msra.mxu0 0
        %1859 = vmatprep.subr.bf16.mxu0 0
        %1860 = vmatpush1.bf16.msra.mxu0 0
        %1861 = vmatprep.subr.bf16.mxu0 0
        %1862 = vmatpush1.bf16.msra.mxu0 0
        %1863 = vmatprep.subr.bf16.mxu0 0
        %1864 = vmatpush1.bf16.msra.mxu0 0
        %1865 = vmatprep.subr.bf16.mxu0 0
        %1866 = vmatpush1.bf16.msra.mxu0 0
        %1867 = vmatprep.subr.bf16.mxu0 0
        %1868 = vmatpush1.bf16.msra.mxu0 0
        %1869 = vmatprep.subr.bf16.mxu0 0
        %1870 = vmatpush1.bf16.msra.mxu0 0
        %1871 = vmatprep.mubr.bf16.mxu0 0
        %1872 = vmatmul.mubr.bf16.gmra.mrb[0].mxu0 %v1752
        %v1873 = vpop.f32.mrb[0].mxu0
        %v1874 = vadd.f32 %v1789, %v1873
        %v1875 = vpop.f32.mrb[0].mxu0
        %v1876 = vpop.f32.mrb[0].mxu0
        %v1877 = vadd.f32 %v1789, %v1876
        %v1878 = vpop.f32.mrb[0].mxu0
        %1879 = vmatprep.mubr.bf16.mxu0 0
        %1880 = vmatmul.mubr.bf16.gmra.mrb[0].mxu0 %v1753
        %v1881 = vpop.f32.mrb[0].mxu0
        %v1882 = vadd.f32 %v1789, %v1881
        %v1883 = vpop.f32.mrb[0].mxu0
        %v1884 = vpop.f32.mrb[0].mxu0
        %v1885 = vadd.f32 %v1789, %v1884
        %v1886 = vpop.f32.mrb[0].mxu0
        %1887 = vmatprep.mubr.bf16.mxu0 0
        %1888 = vmatmul.mubr.bf16.gmra.mrb[0].mxu0 %v1754
        %v1889 = vpop.f32.mrb[0].mxu0
        %v1890 = vadd.f32 %v1789, %v1889
        %v1891 = vpop.f32.mrb[0].mxu0
        %v1892 = vpop.f32.mrb[0].mxu0
        %v1893 = vadd.f32 %v1789, %v1892
        %v1894 = vpop.f32.mrb[0].mxu0
        %1895 = vmatprep.mubr.bf16.mxu0 0
        %1896 = vmatmul.mubr.bf16.gmra.mrb[0].mxu0 %v1755
        %v1897 = vpop.f32.mrb[0].mxu0
        %v1898 = vadd.f32 %v1789, %v1897
        %v1899 = vpop.f32.mrb[0].mxu0
        %v1900 = vpop.f32.mrb[0].mxu0
        %v1901 = vadd.f32 %v1789, %v1900
        %v1902 = vpop.f32.mrb[0].mxu0
        %1903 = vmatprep.mubr.bf16.mxu0 0
        %1904 = vmatmul.mubr.bf16.gmra.mrb[0].mxu0 %v1756
        %v1905 = vpop.f32.mrb[0].mxu0
        %v1906 = vadd.f32 %v1789, %v1905
        %v1907 = vpop.f32.mrb[0].mxu0
        %v1908 = vpop.f32.mrb[0].mxu0
        %v1909 = vadd.f32 %v1789, %v1908
        %v1910 = vpop.f32.mrb[0].mxu0
        %1911 = vmatprep.mubr.bf16.mxu0 0
        %1912 = vmatmul.mubr.bf16.gmra.mrb[0].mxu0 %v1757
        %v1913 = vpop.f32.mrb[0].mxu0
        %v1914 = vadd.f32 %v1789, %v1913
        %v1915 = vpop.f32.mrb[0].mxu0
        %v1916 = vpop.f32.mrb[0].mxu0
        %v1917 = vadd.f32 %v1789, %v1916
        %v1918 = vpop.f32.mrb[0].mxu0
        %1919 = vmatprep.mubr.bf16.mxu0 0
        %1920 = vmatmul.mubr.bf16.gmra.mrb[0].mxu0 %v1758
        %v1921 = vpop.f32.mrb[0].mxu0
        %v1922 = vadd.f32 %v1789, %v1921
        %v1923 = vpop.f32.mrb[0].mxu0
        %v1924 = vpop.f32.mrb[0].mxu0
        %v1925 = vadd.f32 %v1789, %v1924
        %v1926 = vpop.f32.mrb[0].mxu0
        %1927 = vmatprep.mubr.bf16.mxu0 0
        %1928 = vmatmul.mubr.bf16.gmra.mrb[0].mxu0 %v1759
        %v1929 = vpop.f32.mrb[0].mxu0
        %v1930 = vadd.f32 %v1789, %v1929
        %v1931 = vpop.f32.mrb[0].mxu0
        %v1932 = vpop.f32.mrb[0].mxu0
        %v1933 = vadd.f32 %v1789, %v1932
        %v1934 = vpop.f32.mrb[0].mxu0
        %1935 = vmatprep.mubr.bf16.mxu0 0
        %1936 = vmatmul.mubr.bf16.gmra.mrb[0].mxu0 %v1760
        %v1937 = vpop.f32.mrb[0].mxu0
        %v1938 = vadd.f32 %v1789, %v1937
        %v1939 = vpop.f32.mrb[0].mxu0
        %v1940 = vpop.f32.mrb[0].mxu0
        %v1941 = vadd.f32 %v1789, %v1940
        %v1942 = vpop.f32.mrb[0].mxu0
        %1943 = vmatprep.mubr.bf16.mxu0 0
        %1944 = vmatmul.mubr.bf16.gmra.mrb[0].mxu0 %v1761
        %v1945 = vpop.f32.mrb[0].mxu0
        %v1946 = vadd.f32 %v1789, %v1945
        %v1947 = vpop.f32.mrb[0].mxu0
        %v1948 = vpop.f32.mrb[0].mxu0
        %v1949 = vadd.f32 %v1789, %v1948
        %v1950 = vpop.f32.mrb[0].mxu0
        %1951 = vmatprep.mubr.bf16.mxu0 0
        %1952 = vmatmul.mubr.bf16.gmra.mrb[0].mxu0 %v1762
        %v1953 = vpop.f32.mrb[0].mxu0
        %v1954 = vadd.f32 %v1789, %v1953
        %v1955 = vpop.f32.mrb[0].mxu0
        %v1956 = vpop.f32.mrb[0].mxu0
        %v1957 = vadd.f32 %v1789, %v1956
        %v1958 = vpop.f32.mrb[0].mxu0
        %1959 = vmatprep.mubr.bf16.mxu0 0
        %1960 = vmatmul.mubr.bf16.gmra.mrb[0].mxu0 %v1763
        %v1961 = vpop.f32.mrb[0].mxu0
        %v1962 = vadd.f32 %v1789, %v1961
        %v1963 = vpop.f32.mrb[0].mxu0
        %v1964 = vpop.f32.mrb[0].mxu0
        %v1965 = vadd.f32 %v1789, %v1964
        %v1966 = vpop.f32.mrb[0].mxu0
        %1967 = vmatprep.mubr.bf16.mxu0 0
        %1968 = vmatmul.mubr.bf16.gmra.mrb[0].mxu0 %v1764
        %v1969 = vpop.f32.mrb[0].mxu0
        %v1970 = vadd.f32 %v1789, %v1969
        %v1971 = vpop.f32.mrb[0].mxu0
        %v1972 = vpop.f32.mrb[0].mxu0
        %v1973 = vadd.f32 %v1789, %v1972
        %v1974 = vpop.f32.mrb[0].mxu0
        %1975 = vmatprep.mubr.bf16.mxu0 0
        %1976 = vmatmul.mubr.bf16.gmra.mrb[0].mxu0 %v1765
        %v1977 = vpop.f32.mrb[0].mxu0
        %v1978 = vadd.f32 %v1789, %v1977
        %v1979 = vpop.f32.mrb[0].mxu0
        %v1980 = vpop.f32.mrb[0].mxu0
        %v1981 = vadd.f32 %v1789, %v1980
        %v1982 = vpop.f32.mrb[0].mxu0
        %1983 = vmatprep.mubr.bf16.mxu0 0
        %1984 = vmatmul.mubr.bf16.gmra.mrb[0].mxu0 %v1766
        %v1985 = vpop.f32.mrb[0].mxu0
        %v1986 = vadd.f32 %v1789, %v1985
        %v1987 = vpop.f32.mrb[0].mxu0
        %v1988 = vpop.f32.mrb[0].mxu0
        %v1989 = vadd.f32 %v1789, %v1988
        %v1990 = vpop.f32.mrb[0].mxu0
        %1991 = vmatprep.mubr.bf16.mxu0 0
        %1992 = vmatmul.mubr.bf16.gmra.mrb[0].mxu0 %v1767
        %v1993 = vpop.f32.mrb[0].mxu0
        %v1994 = vadd.f32 %v1789, %v1993
        %v1995 = vpop.f32.mrb[0].mxu0
        %v1996 = vpop.f32.mrb[0].mxu0
        %v1997 = vadd.f32 %v1789, %v1996
        %v1998 = vpop.f32.mrb[0].mxu0
        %1999 = vdwg.mxu0
        %v2000 = vadd.f32 %v1874, %v550
        %v2001 = vadd.f32 %v1877, %v554
        %v2002 = vadd.f32 %v1882, %v560
        %v2003 = vadd.f32 %v1885, %v564
        %v2004 = vadd.f32 %v1890, %v570
        %v2005 = vadd.f32 %v1893, %v574
        %v2006 = vadd.f32 %v1898, %v580
        %v2007 = vadd.f32 %v1901, %v584
        %v2008 = vadd.f32 %v1906, %v590
        %v2009 = vadd.f32 %v1909, %v594
        %v2010 = vadd.f32 %v1914, %v600
        %v2011 = vadd.f32 %v1917, %v604
        %v2012 = vadd.f32 %v1922, %v610
        %v2013 = vadd.f32 %v1925, %v614
        %v2014 = vadd.f32 %v1930, %v620
        %v2015 = vadd.f32 %v1933, %v624
        %v2016 = vadd.f32 %v1938, %v630
        %v2017 = vadd.f32 %v1941, %v634
        %v2018 = vadd.f32 %v1946, %v640
        %v2019 = vadd.f32 %v1949, %v644
        %v2020 = vadd.f32 %v1954, %v650
        %v2021 = vadd.f32 %v1957, %v654
        %v2022 = vadd.f32 %v1962, %v660
        %v2023 = vadd.f32 %v1965, %v664
        %v2024 = vadd.f32 %v1970, %v670
        %v2025 = vadd.f32 %v1973, %v674
        %v2026 = vadd.f32 %v1978, %v680
        %v2027 = vadd.f32 %v1981, %v684
        %v2028 = vadd.f32 %v1986, %v690
        %v2029 = vadd.f32 %v1989, %v694
        %v2030 = vadd.f32 %v1994, %v700
        %v2031 = vadd.f32 %v1997, %v704
        %2032 = vst [vmem:[%s271] sm:$0xff] %v2000
        %2033 = vst [vmem:[%s271 + $0x8] sm:$0xff] %v2001
        %2034 = vst [vmem:[%s271 + $0x10] sm:$0xff] %v2002
        %2035 = vst [vmem:[%s271 + $0x18] sm:$0xff] %v2003
        %2036 = vst [vmem:[%s271 + $0x20] sm:$0xff] %v2004
        %2037 = vst [vmem:[%s271 + $0x28] sm:$0xff] %v2005
        %2038 = vst [vmem:[%s271 + $0x30] sm:$0xff] %v2006
        %2039 = vst [vmem:[%s271 + $0x38] sm:$0xff] %v2007
        %2040 = vst [vmem:[%s271 + $0x40] sm:$0xff] %v2008
        %2041 = vst [vmem:[%s271 + $0x48] sm:$0xff] %v2009
        %2042 = vst [vmem:[%s271 + $0x50] sm:$0xff] %v2010
        %2043 = vst [vmem:[%s271 + $0x58] sm:$0xff] %v2011
        %2044 = vst [vmem:[%s271 + $0x60] sm:$0xff] %v2012
        %2045 = vst [vmem:[%s271 + $0x68] sm:$0xff] %v2013
        %2046 = vst [vmem:[%s271 + $0x70] sm:$0xff] %v2014
        %2047 = vst [vmem:[%s271 + $0x78] sm:$0xff] %v2015
        %2048 = vst [vmem:[%s271 + $0x80] sm:$0xff] %v2016
        %2049 = vst [vmem:[%s271 + $0x88] sm:$0xff] %v2017
        %2050 = vst [vmem:[%s271 + $0x90] sm:$0xff] %v2018
        %2051 = vst [vmem:[%s271 + $0x98] sm:$0xff] %v2019
        %2052 = vst [vmem:[%s271 + $0xa0] sm:$0xff] %v2020
        %2053 = vst [vmem:[%s271 + $0xa8] sm:$0xff] %v2021
        %2054 = vst [vmem:[%s271 + $0xb0] sm:$0xff] %v2022
        %2055 = vst [vmem:[%s271 + $0xb8] sm:$0xff] %v2023
        %2056 = vst [vmem:[%s271 + $0xc0] sm:$0xff] %v2024
        %2057 = vst [vmem:[%s271 + $0xc8] sm:$0xff] %v2025
        %2058 = vst [vmem:[%s271 + $0xd0] sm:$0xff] %v2026
        %2059 = vst [vmem:[%s271 + $0xd8] sm:$0xff] %v2027
        %2060 = vst [vmem:[%s271 + $0xe0] sm:$0xff] %v2028
        %2061 = vst [vmem:[%s271 + $0xe8] sm:$0xff] %v2029
        %2062 = vst [vmem:[%s271 + $0xf0] sm:$0xff] %v2030
        %2063 = vst [vmem:[%s271 + $0xf8] sm:$0xff] %v2031
        %s2064 = sand.u32 %s181, 1
        %s2065 = scalar_lea.sflag [#allocation4], %s2064
        %s2066 = sand.u32 %s181, 1
        %s2067 = smul.addr %s2066, 256
        %s2068 = scalar_lea.vmem [#allocation3], %s2067
        // Predicated region
        $region49: #{tpu_custom_call.1} parent=47 // pred_check
          %p2069 = pneg %p191
        $region50: #{tpu_custom_call.1} parent=47 // pred_check_branch
          %2071 = sbr.rel (%p2069) target = $region52
        $region51: #{tpu_custom_call.1} parent=47 // pred_region
          %s2073 = ssub.s32 4096, 4096
          %2074 = vsyncadd %s2065, %s2073
          %s2075 = smul.addr %s21, 32
          %s2076 = smul.addr %s2075, 128
          %s2077 = scalar_lea.hbm %s7, %s2076
          %s2078 = sshll.u32 %s2068, 4
          %s2079 = int_to_ptr.vmem [resolvable:$true] %s2078
          %2084 = dma.vmem_to_hbm [thread:$0]  %s2079, 4096, %s2077, %s2065, 128, 128, 8
        $region52: #{tpu_custom_call.1} parent=47 // pred_fallthru
          _
      $region48: #{tpu_custom_call.1} parent=5 // pred_fallthru
        _
      %p2085 = scmp.le.s32.totalorder 2, %s16
      // Predicated region
      $region53: #{tpu_custom_call.1} parent=5 // pred_check
        %p2086 = pneg %p2085
      $region54: #{tpu_custom_call.1} parent=5 // pred_check_branch
        %2088 = sbr.rel (%p2086) target = $region56
      $region55: #{tpu_custom_call.1} parent=5 // pred_region
        %s2089 = ssub.s32 %s16, 2
        // Predicated region
        $region57: #{tpu_custom_call.1} parent=55 // pred_check
          %p2090 = pneg %p197
        $region58: #{tpu_custom_call.1} parent=55 // pred_check_branch
          %2092 = sbr.rel (%p2090) target = $region60
        $region59: #{tpu_custom_call.1} parent=55 // pred_region
          %s2093 = sand.u32 %s182, 1
          %s2094 = scalar_lea.sflag [#allocation4], %s2093
          %s2095 = sand.u32 %s182, 1
          %s2096 = smul.addr %s2095, 256
          %s2097 = scalar_lea.vmem [#allocation3], %s2096
          %2098 = dma.done %s2094, 4096
        $region60: #{tpu_custom_call.1} parent=55 // pred_fallthru
          _
      $region56: #{tpu_custom_call.1} parent=5 // pred_fallthru
        _
    $region6: #{tpu_custom_call.1} parent=1 // loop_footer
      %s20 = sadd.s32 1, %s16
    $region7: #{tpu_custom_call.1} parent=1 // loop_footer_branch
      %15 = sbr.rel target = $region3
    $region8: #{tpu_custom_call.1} parent=1 // loop_exit
      _
    %2099 = vsyncpa [#allocation4], 1
    %s2100 = scalar_lea.sflag [#allocation4], 1
    %2101 = vsyncpa %s2100, 1

</llo_original>
